<compile_context>
chip_gen: v7x
topology: tpu7x:2x2x1
jax: 0.10.0
libtpu: 0.0.40
codegen_flags: <defaults>
</compile_context>

<pallas_src>
from functools import partial

import numpy as np
import jax
import jax.numpy as jnp
from jax import lax
from jax.experimental import pallas as pl
from jax.experimental.pallas import tpu as pltpu

NFFT = 16
HOP = 8
N_FREQ = NFFT // 2 + 1  # 9
BN_EPS = 1e-5
FRAMES_PER_TILE = 64    # K = F*hop = 512, fn = F*n_freq = 576; Toeplitz weights ~2x1.2MB


def _get_stft_kernels_np(nfft):
    # Rectangular window path (the 'hanning' branch of the original module needs scipy,
    # which the module never imports).
    def kernel_fn(freq, time):
        return np.exp(-1j * (2 * np.pi * time * freq) / float(nfft))

    kernels = np.fromfunction(kernel_fn, (nfft // 2 + 1, nfft), dtype=np.float64)
    win = np.ones((1, nfft), dtype=np.float64)
    kernels = kernels * win
    return np.real(kernels).astype(np.float32), np.imag(kernels).astype(np.float32)


def _build_toeplitz_weights(w_mat, hop, frames):
    """w_mat: (nfft, n_freq). Returns R = ceil(nfft/hop) block-Toeplitz matrices,
    each (frames*hop, frames*n_freq), with frame-major output columns."""
    nfft, n_freq = w_mat.shape
    r = -(-nfft // hop)
    k = frames * hop
    fn = frames * n_freq
    mats = []
    for j in range(r):
        taps = w_mat[j * hop: min((j + 1) * hop, nfft), :]       # (tj, n_freq), tj <= hop
        tj = taps.shape[0]
        tpl = np.zeros((k, fn), dtype=np.float32)
        for f in range(frames):
            tpl[f * hop: f * hop + tj, f * n_freq: (f + 1) * n_freq] = taps
        mats.append(tpl)
    return mats


def _conv_stats_kernel(*refs, n_views, n_freq, frames, w_out):
    # refs = (x_view_0..x_view_{R-1}, toeplitz_0..toeplitz_{R-1}, selector, y_out, stats_out)
    xs = refs[:n_views]
    tps = refs[n_views:2 * n_views]
    sel_ref = refs[2 * n_views]
    y_ref = refs[2 * n_views + 1]
    st_ref = refs[2 * n_views + 2]

    # Conv as dense block-Toeplitz matmul on the MXU: (B, F*hop) @ (F*hop, F*n_freq).
    y = jnp.dot(xs[0][...], tps[0][...], preferred_element_type=jnp.float32)
    for j in range(1, n_views):
        y = y + jnp.dot(xs[j][...], tps[j][...], preferred_element_type=jnp.float32)

    # Single lane-dense store of the whole tile (B, F*n_freq).
    y_ref[0] = y

    # Single-pass BN statistics (sum, sum of squares) per channel.
    # Frame-major columns => frames >= w_out occupy a contiguous column suffix: mask them.
    fn = frames * n_freq
    t = pl.program_id(0)
    col = lax.broadcasted_iota(jnp.int32, (1, fn), 1)
    n_valid_cols = w_out * n_freq - t * fn
    yv = jnp.where(col < n_valid_cols, y, 0.0)
    rows = jnp.concatenate(
        [jnp.sum(yv, axis=0, keepdims=True),
         jnp.sum(yv * yv, axis=0, keepdims=True)], axis=0)           # (2, F*n_freq)
    # Fold the F frame groups down to n_freq channels with a 0/1 selector matmul.
    st_ref[0] = jnp.dot(rows, sel_ref[...], preferred_element_type=jnp.float32)


def _bn_act_kernel(y_ref, scale_ref, shift_ref, o_ref):
    # Folded BatchNorm (one mul + one add per element) + Hardtanh(0, 20).
    z = y_ref[...] * scale_ref[...] + shift_ref[...]
    o_ref[...] = jnp.clip(z, 0.0, 20.0)


def stft_forward(sample, conv_w, conv_b, gamma, beta, hop=HOP,
                 frames_per_tile=FRAMES_PER_TILE):
    """sample: (B, H, T) float32. Returns (B, H_out, n_freq, W_out) like the PyTorch module."""
    _ = conv_b  # conv bias cancels exactly under training-mode BN mean subtraction.
    B, H, T = sample.shape
    n_freq = conv_w.shape[0]
    nfft = conv_w.shape[-1]
    assert H == 1, "kernel specialized for H == 1 (1-D audio input)"
    w_out = (T - nfft) // hop + 1
    assert w_out >= 1

    F = int(frames_per_tile)
    n_tiles = pl.cdiv(w_out, F)
    wp = n_tiles * F
    fn = F * n_freq
    k = F * hop
    r = -(-nfft // hop)           # hop-shifted views per frame

    # Flatten signal, pad so every shifted view has wp*hop samples.  Real frames never
    # read padded zeros (by definition of w_out), so results are exact.
    x = sample.reshape(B, T).astype(jnp.float32)
    pad_len = (wp + r - 1) * hop
    if pad_len > T:
        x = jnp.pad(x, ((0, 0), (0, pad_len - T)))
    x_views = [x[:, j * hop: j * hop + wp * hop] for j in range(r)]

    # Host-side weight preprocessing (tiny): block-Toeplitz conv weights + channel selector.
    w_mat = np.asarray(conv_w, dtype=np.float32).reshape(n_freq, nfft).T   # (nfft, n_freq)
    tpls = [jnp.asarray(m) for m in _build_toeplitz_weights(w_mat, hop, F)]
    sel = jnp.asarray(np.tile(np.eye(n_freq, dtype=np.float32), (F, 1)))   # (fn, n_freq)

    compiler_params = pltpu.CompilerParams(
        dimension_semantics=("parallel",),      # shards time tiles across v7x's 2 TCs
    )

    # ---- Pass 1: conv (block-Toeplitz matmul) + per-tile BN statistics -------------
    x_spec = pl.BlockSpec((B, k), lambda t: (0, t))
    tpl_spec = pl.BlockSpec((k, fn), lambda t: (0, 0))
    sel_spec = pl.BlockSpec((fn, n_freq), lambda t: (0, 0))
    y_spec = pl.BlockSpec((1, B, fn), lambda t: (t, 0, 0))
    st_spec = pl.BlockSpec((1, 2, n_freq), lambda t: (t, 0, 0))

    y_all, stats = pl.pallas_call(
        partial(_conv_stats_kernel, n_views=r, n_freq=n_freq, frames=F, w_out=w_out),
        out_shape=(jax.ShapeDtypeStruct((n_tiles, B, fn), jnp.float32),
                   jax.ShapeDtypeStruct((n_tiles, 2, n_freq), jnp.float32)),
        grid=(n_tiles,),
        in_specs=[x_spec] * r + [tpl_spec] * r + [sel_spec],
        out_specs=(y_spec, st_spec),
        compiler_params=compiler_params,
    )(*x_views, *tpls, sel)

    # ---- Fold BN (training-mode batch stats) into one scale/shift per channel ------
    tot = jnp.sum(stats, axis=0)                       # (2, n_freq)
    count = float(B * w_out)                           # N*H_out*W_out positions per channel
    mean = tot[0] / count
    var = tot[1] / count - mean * mean                 # biased variance (PyTorch training BN)
    scale = gamma.astype(jnp.float32) * lax.rsqrt(var + BN_EPS)
    shift = beta.astype(jnp.float32) - mean * scale
    scale_row = jnp.tile(scale, F).reshape(1, fn)      # frame-major column layout
    shift_row = jnp.tile(shift, F).reshape(1, fn)

    # ---- Pass 2: normalize + Hardtanh, lane-dense elementwise -----------------------
    z = pl.pallas_call(
        _bn_act_kernel,
        out_shape=jax.ShapeDtypeStruct((n_tiles, B, fn), jnp.float32),
        grid=(n_tiles,),
        in_specs=[pl.BlockSpec((1, B, fn), lambda t: (t, 0, 0)),
                  pl.BlockSpec((1, fn), lambda t: (0, 0)),
                  pl.BlockSpec((1, fn), lambda t: (0, 0))],
        out_specs=pl.BlockSpec((1, B, fn), lambda t: (t, 0, 0)),
        compiler_params=compiler_params,
    )(y_all, scale_row, shift_row)

    # Layout back to the module's output: (B, W_out, n_freq) -> (B, 1, n_freq, W_out).
    z = z.transpose(1, 0, 2).reshape(B, wp, n_freq)[:, :w_out, :]
    return z.transpose(0, 2, 1)[:, None, :, :]


def stft_reference(sample, conv_w, conv_b, gamma, beta, hop=HOP):
    """Pure-JAX reference of the same forward pass (for correctness check)."""
    B, H, T = sample.shape
    n_freq = conv_w.shape[0]
    nfft = conv_w.shape[-1]
    w_out = (T - nfft) // hop + 1
    x = sample.reshape(B, T).astype(jnp.float32)
    frames = jnp.stack([x[:, f * hop: f * hop + nfft] for f in range(w_out)], axis=1)
    wm = conv_w.reshape(n_freq, nfft).astype(jnp.float32)
    y = jnp.einsum("bwn,cn->bcw", frames, wm,
                   precision=lax.Precision.HIGHEST) + conv_b[None, :, None]
    mean = jnp.mean(y, axis=(0, 2), keepdims=True)
    var = jnp.mean((y - mean) ** 2, axis=(0, 2), keepdims=True)
    z = (y - mean) / jnp.sqrt(var + BN_EPS) * gamma[None, :, None] + beta[None, :, None]
    z = jnp.clip(z, 0.0, 20.0)
    return z[:, None, :, :]


if __name__ == "__main__":
    key = jax.random.PRNGKey(0)
    k_x, k_b, k_g, k_be, k_x2 = jax.random.split(key, 5)

    # Deterministic parameters: conv weight = real STFT basis (the module's own
    # construction), conv bias / BN affine params from PRNGKey(0).
    real_k, _imag_k = _get_stft_kernels_np(NFFT)                       # (n_freq, nfft)
    conv_w = jnp.asarray(real_k).reshape(N_FREQ, 1, 1, NFFT)           # Conv2d weight shape
    conv_b = 0.1 * jax.random.normal(k_b, (N_FREQ,), dtype=jnp.float32)
    gamma = 1.0 + 0.1 * jax.random.normal(k_g, (N_FREQ,), dtype=jnp.float32)
    beta = 0.1 * jax.random.normal(k_be, (N_FREQ,), dtype=jnp.float32)

    # Case 1: B=2, T chosen so W_out = 128 (exact tiling, 2 time tiles of 64 frames).
    B, H, T = 2, 1, 1032
    sample = jax.random.normal(k_x, (B, H, T), dtype=jnp.float32)
    out = jax.block_until_ready(stft_forward(sample, conv_w, conv_b, gamma, beta, hop=HOP))
    ref = jax.block_until_ready(stft_reference(sample, conv_w, conv_b, gamma, beta, hop=HOP))
    w_out = (T - NFFT) // HOP + 1
    assert out.shape == (B, 1, N_FREQ, w_out), out.shape
    assert np.allclose(np.asarray(out), np.asarray(ref), rtol=1e-3, atol=1e-3), "mismatch (case 1)"

    # Case 2: ragged W_out (124, padded to 128) exercising the stats mask, B=3.
    B2, T2 = 3, 1000
    sample2 = jax.random.normal(k_x2, (B2, 1, T2), dtype=jnp.float32)
    out2 = jax.block_until_ready(stft_forward(sample2, conv_w, conv_b, gamma, beta, hop=HOP))
    ref2 = jax.block_until_ready(stft_reference(sample2, conv_w, conv_b, gamma, beta, hop=HOP))
    w_out2 = (T2 - NFFT) // HOP + 1
    assert out2.shape == (B2, 1, N_FREQ, w_out2), out2.shape
    assert np.allclose(np.asarray(out2), np.asarray(ref2), rtol=1e-3, atol=1e-3), "mismatch (case 2)"

    print("KERNEL_OK")
</pallas_src>

<mosaic_0001>
module attributes {stable_mosaic.version = 11 : i64} {
  func.func @_conv_stats_kernel(%arg0: i32, %arg1: memref<2x512xf32, #tpu.memory_space<vmem>>, %arg2: memref<2x512xf32, #tpu.memory_space<vmem>>, %arg3: memref<512x576xf32, #tpu.memory_space<vmem>>, %arg4: memref<512x576xf32, #tpu.memory_space<vmem>>, %arg5: memref<576x9xf32, #tpu.memory_space<vmem>>, %arg6: memref<1x2x576xf32, #tpu.memory_space<vmem>>, %arg7: memref<1x2x9xf32, #tpu.memory_space<vmem>>) attributes {dimension_semantics = [#tpu.dimension_semantics<parallel>], iteration_bounds = array<i64: 2>, scalar_prefetch = 0 : i64, scratch_operands = 0 : i64, tpu.core_type = #tpu.core_type<tc>, window_params = [{transform_indices = @transform_0, window_bounds = array<i64: 2, 512>}, {transform_indices = @transform_1, window_bounds = array<i64: 2, 512>}, {pipeline_mode = #tpu.pipeline_mode<synchronous>, transform_indices = @transform_2, window_bounds = array<i64: 512, 576>}, {pipeline_mode = #tpu.pipeline_mode<synchronous>, transform_indices = @transform_3, window_bounds = array<i64: 512, 576>}, {pipeline_mode = #tpu.pipeline_mode<synchronous>, transform_indices = @transform_4, window_bounds = array<i64: 576, 9>}, {transform_indices = @transform_5, window_bounds = array<i64: 1, 2, 576>}, {transform_indices = @transform_6, window_bounds = array<i64: 1, 2, 9>}]} {
    %c0 = arith.constant 0 : index
    %c0_0 = arith.constant 0 : index
    %0 = vector.load %arg1[%c0, %c0_0] : memref<2x512xf32, #tpu.memory_space<vmem>>, vector<2x512xf32>
    %c0_1 = arith.constant 0 : index
    %c0_2 = arith.constant 0 : index
    %1 = vector.load %arg3[%c0_1, %c0_2] : memref<512x576xf32, #tpu.memory_space<vmem>>, vector<512x576xf32>
    %cst = arith.constant dense<0.000000e+00> : vector<2x576xf32>
    %2 = tpu.matmul %0, %1, %cst {dimension_numbers = #tpu.dot_dimension_numbers<[1], [0], [0], [1], [0, 0, 1, 1], [], []>} : vector<2x512xf32>, vector<512x576xf32>, vector<2x576xf32> -> vector<2x576xf32>
    %c0_3 = arith.constant 0 : index
    %c0_4 = arith.constant 0 : index
    %3 = vector.load %arg2[%c0_3, %c0_4] : memref<2x512xf32, #tpu.memory_space<vmem>>, vector<2x512xf32>
    %c0_5 = arith.constant 0 : index
    %c0_6 = arith.constant 0 : index
    %4 = vector.load %arg4[%c0_5, %c0_6] : memref<512x576xf32, #tpu.memory_space<vmem>>, vector<512x576xf32>
    %cst_7 = arith.constant dense<0.000000e+00> : vector<2x576xf32>
    %5 = tpu.matmul %3, %4, %cst_7 {dimension_numbers = #tpu.dot_dimension_numbers<[1], [0], [0], [1], [0, 0, 1, 1], [], []>} : vector<2x512xf32>, vector<512x576xf32>, vector<2x576xf32> -> vector<2x576xf32>
    %6 = arith.addf %2, %5 : vector<2x576xf32>
    %c0_8 = arith.constant 0 : index
    %c0_9 = arith.constant 0 : index
    %c0_10 = arith.constant 0 : index
    %7 = vector.load %arg6[%c0_8, %c0_9, %c0_10] : memref<1x2x576xf32, #tpu.memory_space<vmem>>, vector<1x2x576xf32>
    %8 = vector.shape_cast %7 : vector<1x2x576xf32> to vector<2x576xf32>
    %9 = vector.shape_cast %6 : vector<2x576xf32> to vector<1x2x576xf32>
    tpu.vector_store %arg6[%c0_8, %c0_9, %c0_10], %9 {strides = array<i32>} : memref<1x2x576xf32, #tpu.memory_space<vmem>>, vector<1x2x576xf32>,
    %10 = tpu.iota {dimensions = array<i32: 1>} : vector<1x576xi32>
    %c576_i32 = arith.constant 576 : i32
    %11 = arith.muli %arg0, %c576_i32 : i32
    %c1152_i32 = arith.constant 1152 : i32
    %12 = arith.subi %c1152_i32, %11 : i32
    %13 = vector.broadcast %12 : i32 to vector<1x576xi32>
    %14 = arith.cmpi slt, %10, %13 : vector<1x576xi32>
    %cst_11 = arith.constant 0.000000e+00 : f32
    %15 = vector.shape_cast %14 : vector<1x576xi1> to vector<1x576xi1>
    %16 = vector.broadcast %15 : vector<1x576xi1> to vector<2x576xi1>
    %17 = vector.broadcast %cst_11 : f32 to vector<2x576xf32>
    %18 = arith.select %16, %6, %17 : vector<2x576xi1>, vector<2x576xf32>
    %cst_12 = arith.constant dense<0.000000e+00> : vector<576xf32>
    %19 = vector.multi_reduction <add>, %18, %cst_12 [0] : vector<2x576xf32> to vector<576xf32>
    %20 = vector.shape_cast %19 : vector<576xf32> to vector<1x576xf32>
    %21 = arith.mulf %18, %18 : vector<2x576xf32>
    %cst_13 = arith.constant dense<0.000000e+00> : vector<576xf32>
    %22 = vector.multi_reduction <add>, %21, %cst_13 [0] : vector<2x576xf32> to vector<576xf32>
    %23 = vector.shape_cast %22 : vector<576xf32> to vector<1x576xf32>
    %24 = tpu.concatenate %20, %23 in 0 : vector<1x576xf32>, vector<1x576xf32> -> vector<2x576xf32>
    %c0_14 = arith.constant 0 : index
    %c0_15 = arith.constant 0 : index
    %25 = vector.load %arg5[%c0_14, %c0_15] : memref<576x9xf32, #tpu.memory_space<vmem>>, vector<576x9xf32>
    %cst_16 = arith.constant dense<0.000000e+00> : vector<2x9xf32>
    %26 = tpu.matmul %24, %25, %cst_16 {dimension_numbers = #tpu.dot_dimension_numbers<[1], [0], [0], [1], [0, 0, 1, 1], [], []>} : vector<2x576xf32>, vector<576x9xf32>, vector<2x9xf32> -> vector<2x9xf32>
    %c0_17 = arith.constant 0 : index
    %c0_18 = arith.constant 0 : index
    %c0_19 = arith.constant 0 : index
    %27 = vector.load %arg7[%c0_17, %c0_18, %c0_19] : memref<1x2x9xf32, #tpu.memory_space<vmem>>, vector<1x2x9xf32>
    %28 = vector.shape_cast %27 : vector<1x2x9xf32> to vector<2x9xf32>
    %29 = vector.shape_cast %26 : vector<2x9xf32> to vector<1x2x9xf32>
    tpu.vector_store %arg7[%c0_17, %c0_18, %c0_19], %29 {strides = array<i32>} : memref<1x2x9xf32, #tpu.memory_space<vmem>>, vector<1x2x9xf32>,
    return
  }
  func.func @transform_0(%arg0: i32) -> (i32, i32) {
    %c0_i32 = arith.constant 0 : i32
    %c0_i32_0 = arith.constant 0 : i32
    return %c0_i32, %arg0 : i32, i32
  }
  func.func @transform_1(%arg0: i32) -> (i32, i32) {
    %c0_i32 = arith.constant 0 : i32
    %c0_i32_0 = arith.constant 0 : i32
    return %c0_i32, %arg0 : i32, i32
  }
  func.func @transform_2(%arg0: i32) -> (i32, i32) {
    %c0_i32 = arith.constant 0 : i32
    %c0_i32_0 = arith.constant 0 : i32
    %c0_i32_1 = arith.constant 0 : i32
    return %c0_i32, %c0_i32_0 : i32, i32
  }
  func.func @transform_3(%arg0: i32) -> (i32, i32) {
    %c0_i32 = arith.constant 0 : i32
    %c0_i32_0 = arith.constant 0 : i32
    %c0_i32_1 = arith.constant 0 : i32
    return %c0_i32, %c0_i32_0 : i32, i32
  }
  func.func @transform_4(%arg0: i32) -> (i32, i32) {
    %c0_i32 = arith.constant 0 : i32
    %c0_i32_0 = arith.constant 0 : i32
    %c0_i32_1 = arith.constant 0 : i32
    return %c0_i32, %c0_i32_0 : i32, i32
  }
  func.func @transform_5(%arg0: i32) -> (i32, i32, i32) {
    %c0_i32 = arith.constant 0 : i32
    %c0_i32_0 = arith.constant 0 : i32
    %c0_i32_1 = arith.constant 0 : i32
    return %arg0, %c0_i32, %c0_i32_0 : i32, i32, i32
  }
  func.func @transform_6(%arg0: i32) -> (i32, i32, i32) {
    %c0_i32 = arith.constant 0 : i32
    %c0_i32_0 = arith.constant 0 : i32
    %c0_i32_1 = arith.constant 0 : i32
    return %arg0, %c0_i32, %c0_i32_0 : i32, i32, i32
  }
}

</mosaic_0001>

<llo_original>
// kernel: tpu_custom_call.1
$region0: #{tpu_custom_call.1}
  #allocation0 [shape = 'u32[]', space=smem, size = 0x4, offset = 0x4, fixed_abs, tag = 'smem constant byte address 0x4 - core index']
  #allocation1 [shape = 'u32[144,128]{1,0:T(1,128)}', space=vmem, size = 0x12000, scoped, tag = 'internal scratch']
  %s0 = inlined_call_operand.vmem [shape: f32[2,1024], index: 0, kind: input, shape index: {}]
  %s1 = inlined_call_operand.vmem [shape: f32[2,1024], index: 1, kind: input, shape index: {}]
  %s2 = inlined_call_operand.vmem [shape: f32[512,576], index: 2, kind: input, shape index: {}]
  %s3 = inlined_call_operand.vmem [shape: f32[512,576], index: 3, kind: input, shape index: {}]
  %s4 = inlined_call_operand.vmem [shape: f32[576,9], index: 4, kind: input, shape index: {}]
  %s5 = inlined_call_operand.hbm [shape: f32[2,2,576], index: 5, kind: output, shape index: {0}]
  %s6 = inlined_call_operand.hbm [shape: f32[2,2,9], index: 6, kind: output, shape index: {1}]
  %7 = xla_tuple %s5, %s6
  %s8 = sld [smem:[#allocation0]]
  $region61: #{tpu_custom_call.1} parent=0
    _
  %s10 = ssub.s32 1, %s8
  %s11 = scalar_select 0, %s10, %s8
  $region1: #{tpu_custom_call.1} parent=0
    #allocation2 [shape = 'u8[10240]{0}', space=vmem, size = 0x2800, scoped, tag = 'output window, operand 0']
    #allocation3 [shape = 's32[2]{0}', space=sflag, size = 0x8, scoped, tag = 'scoped memory for tpu_custom_call.1']
    #allocation4 [shape = 'u8[2048]{0}', space=vmem, size = 0x800, scoped, tag = 'output window, operand 1']
    #allocation5 [shape = 's32[2]{0}', space=sflag, size = 0x8, scoped, tag = 'scoped memory for tpu_custom_call.1']
    %12 = vsyncpa [#allocation3], 0
    %s13 = scalar_lea.sflag [#allocation3], 1
    %14 = vsyncpa %s13, 0
    %15 = vsyncpa [#allocation5], 0
    %s16 = scalar_lea.sflag [#allocation5], 1
    %17 = vsyncpa %s16, 0
    loop: start=0, step=1, limit=4
    $region2: #{tpu_custom_call.1} parent=1 // loop_pre_header
      _
    $region3: #{tpu_custom_call.1} parent=1 // loop_header
      %s19 = sphi 0, %s23
      %p20 = scmp.ge.s32.totalorder %s19, 4
      %s29 = sphi 0, %s31
      %s32 = sphi 0, %s29
      %s33 = sphi 0, %s32
      %s49 = sphi 0, %s33
      %s55 = sphi 0, %s57
      %s58 = sphi 0, %s55
      %s59 = sphi 0, %s58
      %s75 = sphi 0, %s59
      %s79 = sphi 0, %s79
      %s81 = sphi 0, %s79
      %s82 = sphi 0, %s81
      %s96 = sphi 0, %s82
      %s100 = sphi 0, %s100
      %s102 = sphi 0, %s100
      %s103 = sphi 0, %s102
      %s117 = sphi 0, %s103
      %s121 = sphi 0, %s121
      %s123 = sphi 0, %s121
      %s124 = sphi 0, %s123
      %s138 = sphi 0, %s124
      %s144 = sphi 0, %s146
      %s147 = sphi 0, %s144
      %s148 = sphi 0, %s147
      %s164 = sphi 0, %s148
      %s170 = sphi 0, %s172
      %s173 = sphi 0, %s170
      %s174 = sphi 0, %s173
      %s190 = sphi 0, %s174
    $region4: #{tpu_custom_call.1} parent=1 // loop_header_branch
      %22 = sbr.rel (%p20) target = $region8
    $region5: #{tpu_custom_call.1} parent=1 // loop_body
      %s24 = ssub.s32 %s19, 1
      %s25 = ssub.s32 %s19, 2
      %s26 = sadd.s32 %s19, 1
      %s27 = ssub.s32 %s19, %s26
      %p28 = scmp.eq.s32.totalorder %s27, 0
      %s30 = sadd.s32 %s29, 1
      %s31 = scalar_select %p28, %s29, %s30
      %p34 = pneg %p28
      %p35 = scmp.eq.s32.totalorder %s19, 1
      %p36 = por %p34, %p35
      %p37 = scmp.ne.s32.totalorder %s29, %s32
      %p38 = scmp.eq.s32.totalorder %s19, 0
      %p39 = por %p37, %p38
      %p40 = scmp.ne.s32.totalorder %s29, %s32
      %p41 = scmp.eq.s32.totalorder %s24, 1
      %p42 = por %p40, %p41
      %p43 = scmp.ne.s32.totalorder %s32, %s33
      %p44 = scmp.eq.s32.totalorder %s24, 0
      %p45 = por %p43, %p44
      %p46 = scmp.ne.s32.totalorder %s32, %s33
      %p47 = scmp.eq.s32.totalorder %s25, 1
      %p48 = por %p46, %p47
      %p50 = scmp.ne.s32.totalorder %s33, %s49
      %p51 = scmp.eq.s32.totalorder %s25, 0
      %p52 = por %p50, %p51
      %s53 = ssub.s32 %s19, %s26
      %p54 = scmp.eq.s32.totalorder %s53, 0
      %s56 = sadd.s32 %s55, 1
      %s57 = scalar_select %p54, %s55, %s56
      %p60 = pneg %p54
      %p61 = scmp.eq.s32.totalorder %s19, 1
      %p62 = por %p60, %p61
      %p63 = scmp.ne.s32.totalorder %s55, %s58
      %p64 = scmp.eq.s32.totalorder %s19, 0
      %p65 = por %p63, %p64
      %p66 = scmp.ne.s32.totalorder %s55, %s58
      %p67 = scmp.eq.s32.totalorder %s24, 1
      %p68 = por %p66, %p67
      %p69 = scmp.ne.s32.totalorder %s58, %s59
      %p70 = scmp.eq.s32.totalorder %s24, 0
      %p71 = por %p69, %p70
      %p72 = scmp.ne.s32.totalorder %s58, %s59
      %p73 = scmp.eq.s32.totalorder %s25, 1
      %p74 = por %p72, %p73
      %p76 = scmp.ne.s32.totalorder %s59, %s75
      %p77 = scmp.eq.s32.totalorder %s25, 0
      %p78 = por %p76, %p77
      %s80 = sadd.s32 %s79, 1
      %p83 = scmp.eq.s32.totalorder %s19, 1
      %p84 = scmp.ne.s32.totalorder %s79, %s81
      %p85 = scmp.eq.s32.totalorder %s19, 0
      %p86 = por %p84, %p85
      %p87 = scmp.ne.s32.totalorder %s79, %s81
      %p88 = scmp.eq.s32.totalorder %s24, 1
      %p89 = por %p87, %p88
      %p90 = scmp.ne.s32.totalorder %s81, %s82
      %p91 = scmp.eq.s32.totalorder %s24, 0
      %p92 = por %p90, %p91
      %p93 = scmp.ne.s32.totalorder %s81, %s82
      %p94 = scmp.eq.s32.totalorder %s25, 1
      %p95 = por %p93, %p94
      %p97 = scmp.ne.s32.totalorder %s82, %s96
      %p98 = scmp.eq.s32.totalorder %s25, 0
      %p99 = por %p97, %p98
      %s101 = sadd.s32 %s100, 1
      %p104 = scmp.eq.s32.totalorder %s19, 1
      %p105 = scmp.ne.s32.totalorder %s100, %s102
      %p106 = scmp.eq.s32.totalorder %s19, 0
      %p107 = por %p105, %p106
      %p108 = scmp.ne.s32.totalorder %s100, %s102
      %p109 = scmp.eq.s32.totalorder %s24, 1
      %p110 = por %p108, %p109
      %p111 = scmp.ne.s32.totalorder %s102, %s103
      %p112 = scmp.eq.s32.totalorder %s24, 0
      %p113 = por %p111, %p112
      %p114 = scmp.ne.s32.totalorder %s102, %s103
      %p115 = scmp.eq.s32.totalorder %s25, 1
      %p116 = por %p114, %p115
      %p118 = scmp.ne.s32.totalorder %s103, %s117
      %p119 = scmp.eq.s32.totalorder %s25, 0
      %p120 = por %p118, %p119
      %s122 = sadd.s32 %s121, 1
      %p125 = scmp.eq.s32.totalorder %s19, 1
      %p126 = scmp.ne.s32.totalorder %s121, %s123
      %p127 = scmp.eq.s32.totalorder %s19, 0
      %p128 = por %p126, %p127
      %p129 = scmp.ne.s32.totalorder %s121, %s123
      %p130 = scmp.eq.s32.totalorder %s24, 1
      %p131 = por %p129, %p130
      %p132 = scmp.ne.s32.totalorder %s123, %s124
      %p133 = scmp.eq.s32.totalorder %s24, 0
      %p134 = por %p132, %p133
      %p135 = scmp.ne.s32.totalorder %s123, %s124
      %p136 = scmp.eq.s32.totalorder %s25, 1
      %p137 = por %p135, %p136
      %p139 = scmp.ne.s32.totalorder %s124, %s138
      %p140 = scmp.eq.s32.totalorder %s25, 0
      %p141 = por %p139, %p140
      %s142 = ssub.s32 %s19, %s26
      %p143 = scmp.eq.s32.totalorder %s142, 0
      %s145 = sadd.s32 %s144, 1
      %s146 = scalar_select %p143, %s144, %s145
      %p149 = pneg %p143
      %p150 = scmp.eq.s32.totalorder %s19, 1
      %p151 = por %p149, %p150
      %p152 = scmp.ne.s32.totalorder %s144, %s147
      %p153 = scmp.eq.s32.totalorder %s19, 0
      %p154 = por %p152, %p153
      %p155 = scmp.ne.s32.totalorder %s144, %s147
      %p156 = scmp.eq.s32.totalorder %s24, 1
      %p157 = por %p155, %p156
      %p158 = scmp.ne.s32.totalorder %s147, %s148
      %p159 = scmp.eq.s32.totalorder %s24, 0
      %p160 = por %p158, %p159
      %p161 = scmp.ne.s32.totalorder %s147, %s148
      %p162 = scmp.eq.s32.totalorder %s25, 1
      %p163 = por %p161, %p162
      %p165 = scmp.ne.s32.totalorder %s148, %s164
      %p166 = scmp.eq.s32.totalorder %s25, 0
      %p167 = por %p165, %p166
      %s168 = ssub.s32 %s19, %s26
      %p169 = scmp.eq.s32.totalorder %s168, 0
      %s171 = sadd.s32 %s170, 1
      %s172 = scalar_select %p169, %s170, %s171
      %p175 = pneg %p169
      %p176 = scmp.eq.s32.totalorder %s19, 1
      %p177 = por %p175, %p176
      %p178 = scmp.ne.s32.totalorder %s170, %s173
      %p179 = scmp.eq.s32.totalorder %s19, 0
      %p180 = por %p178, %p179
      %p181 = scmp.ne.s32.totalorder %s170, %s173
      %p182 = scmp.eq.s32.totalorder %s24, 1
      %p183 = por %p181, %p182
      %p184 = scmp.ne.s32.totalorder %s173, %s174
      %p185 = scmp.eq.s32.totalorder %s24, 0
      %p186 = por %p184, %p185
      %p187 = scmp.ne.s32.totalorder %s173, %s174
      %p188 = scmp.eq.s32.totalorder %s25, 1
      %p189 = por %p187, %p188
      %p191 = scmp.ne.s32.totalorder %s174, %s190
      %p192 = scmp.eq.s32.totalorder %s25, 0
      %p193 = por %p191, %p192
      %p194 = scmp.le.s32.totalorder 1, %s19
      %p195 = scmp.lt.s32.totalorder %s19, 3
      %p196 = pnand %p194, %p195
      %p197 = pneg %p196
      // Predicated region
      $region9: #{tpu_custom_call.1} parent=5 // pred_check
        _
      $region10: #{tpu_custom_call.1} parent=5 // pred_check_branch
        %199 = sbr.rel (%p196) target = $region12
      $region11: #{tpu_custom_call.1} parent=5 // pred_region
        %s200 = ssub.s32 %s19, 1
        // Predicated region
        $region13: #{tpu_custom_call.1} parent=11 // pred_check
          %p201 = pneg %p92
        $region14: #{tpu_custom_call.1} parent=11 // pred_check_branch
          %203 = sbr.rel (%p201) target = $region16
        $region15: #{tpu_custom_call.1} parent=11 // pred_region
          _
        $region16: #{tpu_custom_call.1} parent=11 // pred_fallthru
          _
        // Predicated region
        $region17: #{tpu_custom_call.1} parent=11 // pred_check
          %p204 = pneg %p113
        $region18: #{tpu_custom_call.1} parent=11 // pred_check_branch
          %206 = sbr.rel (%p204) target = $region20
        $region19: #{tpu_custom_call.1} parent=11 // pred_region
          _
        $region20: #{tpu_custom_call.1} parent=11 // pred_fallthru
          _
        // Predicated region
        $region21: #{tpu_custom_call.1} parent=11 // pred_check
          %p207 = pneg %p134
        $region22: #{tpu_custom_call.1} parent=11 // pred_check_branch
          %209 = sbr.rel (%p207) target = $region24
        $region23: #{tpu_custom_call.1} parent=11 // pred_region
          _
        $region24: #{tpu_custom_call.1} parent=11 // pred_fallthru
          _
      $region12: #{tpu_custom_call.1} parent=5 // pred_fallthru
        _
      %p210 = scmp.lt.s32.totalorder %s19, 2
      // Predicated region
      $region25: #{tpu_custom_call.1} parent=5 // pred_check
        %p211 = pneg %p210
      $region26: #{tpu_custom_call.1} parent=5 // pred_check_branch
        %213 = sbr.rel (%p211) target = $region28
      $region27: #{tpu_custom_call.1} parent=5 // pred_region
        // Predicated region
        $region29: #{tpu_custom_call.1} parent=27 // pred_check
          %p214 = pneg %p39
        $region30: #{tpu_custom_call.1} parent=27 // pred_check_branch
          %216 = sbr.rel (%p214) target = $region32
        $region31: #{tpu_custom_call.1} parent=27 // pred_region
          %s217 = smul.u32 4, %s19
          %p218 = scmp.lt.s32.totalorder %s217, 7
          %s219 = scalar_select %p218, %s217, 7
          %s220 = smul.addr %s219, 2
          %s221 = scalar_lea.vmem %s0, %s220
          %s222 = smul.u32 4, %s19
        $region32: #{tpu_custom_call.1} parent=27 // pred_fallthru
          _
        // Predicated region
        $region33: #{tpu_custom_call.1} parent=27 // pred_check
          %p223 = pneg %p65
        $region34: #{tpu_custom_call.1} parent=27 // pred_check_branch
          %225 = sbr.rel (%p223) target = $region36
        $region35: #{tpu_custom_call.1} parent=27 // pred_region
          %s226 = smul.u32 4, %s19
          %p227 = scmp.lt.s32.totalorder %s226, 7
          %s228 = scalar_select %p227, %s226, 7
          %s229 = smul.addr %s228, 2
          %s230 = scalar_lea.vmem %s1, %s229
          %s231 = smul.u32 4, %s19
        $region36: #{tpu_custom_call.1} parent=27 // pred_fallthru
          _
      $region28: #{tpu_custom_call.1} parent=5 // pred_fallthru
        _
      %p232 = scmp.le.s32.totalorder 1, %s19
      %p233 = scmp.lt.s32.totalorder %s19, 3
      %p234 = pnand %p232, %p233
      %p235 = pneg %p234
      // Predicated region
      $region37: #{tpu_custom_call.1} parent=5 // pred_check
        _
      $region38: #{tpu_custom_call.1} parent=5 // pred_check_branch
        %237 = sbr.rel (%p234) target = $region40
      $region39: #{tpu_custom_call.1} parent=5 // pred_region
        %s238 = ssub.s32 %s19, 1
        %s239 = smul.u32 4, %s24
        %p240 = scmp.lt.s32.totalorder %s239, 7
        %s241 = scalar_select %p240, %s239, 7
        %s242 = smul.addr %s241, 2
        %s243 = scalar_lea.vmem %s0, %s242
        %p244 = pneg %p45
        %p245 = pneg %p42
        %s246 = smul.u32 4, %s24
        %p247 = scmp.lt.s32.totalorder %s246, 7
        %s248 = scalar_select %p247, %s246, 7
        %s249 = smul.addr %s248, 2
        %s250 = scalar_lea.vmem %s1, %s249
        %p251 = pneg %p71
        %p252 = pneg %p68
        %p253 = pneg %p92
        %p254 = pneg %p89
        %p255 = pneg %p113
        %p256 = pneg %p110
        %p257 = pneg %p134
        %p258 = pneg %p131
        %p259 = pneg %p160
        %p260 = pneg %p157
        %s261 = sand.u32 %s147, 1
        %s262 = scalar_lea.sflag [#allocation3], %s261
        %s263 = sand.u32 %s147, 1
        %s264 = smul.addr %s263, 10
        %s265 = scalar_lea.vmem [#allocation2], %s264
        %p266 = pneg %p186
        %p267 = pneg %p183
        %s268 = sand.u32 %s173, 1
        %s269 = scalar_lea.sflag [#allocation5], %s268
        %s270 = sand.u32 %s173, 1
        %s271 = smul.addr %s270, 2
        %s272 = scalar_lea.vmem [#allocation4], %s271
        %s273 = smul.u32 4, %s24
        %p274 = scmp.lt.s32.totalorder %s273, 7
        %s275 = scalar_select %p274, %s273, 7
        %s276 = smul.addr %s275, 2
        %s277 = scalar_lea.vmem %s0, %s276
        %s278 = smul.u32 4, %s24
        %s279 = smul.u32 4, %s24
        %p280 = scmp.lt.s32.totalorder %s279, 7
        %s281 = scalar_select %p280, %s279, 7
        %s282 = smul.addr %s281, 2
        %s283 = scalar_lea.vmem %s1, %s282
        %s284 = smul.u32 4, %s24
        %v285 = vld [vmem:[%s277] sm:$0xff]
        %v286 = vld [vmem:[%s2] sm:$0xff]
        %v287 = vld [vmem:[%s2 + $0x8] sm:$0xff]
        %v288 = vld [vmem:[%s2 + $0x10] sm:$0xff]
        %v289 = vld [vmem:[%s2 + $0x18] sm:$0xff]
        %v290 = vld [vmem:[%s2 + $0x20] sm:$0xff]
        %v291 = vld [vmem:[%s2 + $0x28] sm:$0xff]
        %v292 = vld [vmem:[%s2 + $0x30] sm:$0xff]
        %v293 = vld [vmem:[%s2 + $0x38] sm:$0xff]
        %v294 = vld [vmem:[%s2 + $0x40] sm:$0xff]
        %v295 = vld [vmem:[%s2 + $0x48] sm:$0xff]
        %v296 = vld [vmem:[%s2 + $0x50] sm:$0xff]
        %v297 = vld [vmem:[%s2 + $0x58] sm:$0xff]
        %v298 = vld [vmem:[%s2 + $0x60] sm:$0xff]
        %v299 = vld [vmem:[%s2 + $0x68] sm:$0xff]
        %v300 = vld [vmem:[%s2 + $0x70] sm:$0xff]
        %v301 = vld [vmem:[%s2 + $0x78] sm:$0xff]
        %v302 = vld [vmem:[%s2 + $0x80] sm:$0xff]
        %v303 = vld [vmem:[%s2 + $0x88] sm:$0xff]
        %v304 = vld [vmem:[%s2 + $0x90] sm:$0xff]
        %v305 = vld [vmem:[%s2 + $0x98] sm:$0xff]
        %v306 = vld [vmem:[%s2 + $0xa0] sm:$0xff]
        %v307 = vld [vmem:[%s2 + $0xa8] sm:$0xff]
        %v308 = vld [vmem:[%s2 + $0xb0] sm:$0xff]
        %v309 = vld [vmem:[%s2 + $0xb8] sm:$0xff]
        %v310 = vld [vmem:[%s2 + $0xc0] sm:$0xff]
        %v311 = vld [vmem:[%s2 + $0xc8] sm:$0xff]
        %v312 = vld [vmem:[%s2 + $0xd0] sm:$0xff]
        %v313 = vld [vmem:[%s2 + $0xd8] sm:$0xff]
        %v314 = vld [vmem:[%s2 + $0xe0] sm:$0xff]
        %v315 = vld [vmem:[%s2 + $0xe8] sm:$0xff]
        %v316 = vld [vmem:[%s2 + $0xf0] sm:$0xff]
        %v317 = vld [vmem:[%s2 + $0xf8] sm:$0xff]
        %v318 = vld [vmem:[%s2 + $0x100] sm:$0xff]
        %v319 = vld [vmem:[%s2 + $0x108] sm:$0xff]
        %v320 = vld [vmem:[%s2 + $0x110] sm:$0xff]
        %v321 = vld [vmem:[%s2 + $0x118] sm:$0xff]
        %v322 = vld [vmem:[%s2 + $0x120] sm:$0xff]
        %v323 = vld [vmem:[%s2 + $0x128] sm:$0xff]
        %v324 = vld [vmem:[%s2 + $0x130] sm:$0xff]
        %v325 = vld [vmem:[%s2 + $0x138] sm:$0xff]
        %v326 = vld [vmem:[%s2 + $0x140] sm:$0xff]
        %v327 = vld [vmem:[%s2 + $0x148] sm:$0xff]
        %v328 = vld [vmem:[%s2 + $0x150] sm:$0xff]
        %v329 = vld [vmem:[%s2 + $0x158] sm:$0xff]
        %v330 = vld [vmem:[%s2 + $0x160] sm:$0xff]
        %v331 = vld [vmem:[%s2 + $0x168] sm:$0xff]
        %v332 = vld [vmem:[%s2 + $0x170] sm:$0xff]
        %v333 = vld [vmem:[%s2 + $0x178] sm:$0xff]
        %v334 = vld [vmem:[%s2 + $0x180] sm:$0xff]
        %v335 = vld [vmem:[%s2 + $0x188] sm:$0xff]
        %v336 = vld [vmem:[%s2 + $0x190] sm:$0xff]
        %v337 = vld [vmem:[%s2 + $0x198] sm:$0xff]
        %v338 = vld [vmem:[%s2 + $0x1a0] sm:$0xff]
        %v339 = vld [vmem:[%s2 + $0x1a8] sm:$0xff]
        %v340 = vld [vmem:[%s2 + $0x1b0] sm:$0xff]
        %v341 = vld [vmem:[%s2 + $0x1b8] sm:$0xff]
        %v342 = vld [vmem:[%s2 + $0x1c0] sm:$0xff]
        %v343 = vld [vmem:[%s2 + $0x1c8] sm:$0xff]
        %v344 = vld [vmem:[%s2 + $0x1d0] sm:$0xff]
        %v345 = vld [vmem:[%s2 + $0x1d8] sm:$0xff]
        %v346 = vld [vmem:[%s2 + $0x1e0] sm:$0xff]
        %v347 = vld [vmem:[%s2 + $0x1e8] sm:$0xff]
        %v348 = vld [vmem:[%s2 + $0x1f0] sm:$0xff]
        %v349 = vld [vmem:[%s2 + $0x1f8] sm:$0xff]
        %v350 = vld [vmem:[%s2 + $0x200] sm:$0xff]
        %v351 = vld [vmem:[%s2 + $0x208] sm:$0xff]
        %v352 = vld [vmem:[%s2 + $0x210] sm:$0xff]
        %v353 = vld [vmem:[%s2 + $0x218] sm:$0xff]
        %v354 = vld [vmem:[%s2 + $0x220] sm:$0xff]
        %v355 = vld [vmem:[%s2 + $0x228] sm:$0xff]
        %v356 = vld [vmem:[%s2 + $0x230] sm:$0xff]
        %v357 = vld [vmem:[%s2 + $0x238] sm:$0xff]
        %v358 = vld [vmem:[%s2 + $0x240] sm:$0xff]
        %v359 = vld [vmem:[%s2 + $0x248] sm:$0xff]
        %v360 = vld [vmem:[%s2 + $0x250] sm:$0xff]
        %v361 = vld [vmem:[%s2 + $0x258] sm:$0xff]
        %v362 = vld [vmem:[%s2 + $0x260] sm:$0xff]
        %v363 = vld [vmem:[%s2 + $0x268] sm:$0xff]
        %v364 = vld [vmem:[%s2 + $0x270] sm:$0xff]
        %v365 = vld [vmem:[%s2 + $0x278] sm:$0xff]
        %v366 = vld [vmem:[%s2 + $0x280] sm:$0xff]
        %v367 = vld [vmem:[%s2 + $0x288] sm:$0xff]
        %v368 = vld [vmem:[%s2 + $0x290] sm:$0xff]
        %v369 = vld [vmem:[%s2 + $0x298] sm:$0xff]
        %v370 = vld [vmem:[%s2 + $0x2a0] sm:$0xff]
        %v371 = vld [vmem:[%s2 + $0x2a8] sm:$0xff]
        %v372 = vld [vmem:[%s2 + $0x2b0] sm:$0xff]
        %v373 = vld [vmem:[%s2 + $0x2b8] sm:$0xff]
        %v374 = vld [vmem:[%s2 + $0x2c0] sm:$0xff]
        %v375 = vld [vmem:[%s2 + $0x2c8] sm:$0xff]
        %v376 = vld [vmem:[%s2 + $0x2d0] sm:$0xff]
        %v377 = vld [vmem:[%s2 + $0x2d8] sm:$0xff]
        %v378 = vld [vmem:[%s2 + $0x2e0] sm:$0xff]
        %v379 = vld [vmem:[%s2 + $0x2e8] sm:$0xff]
        %v380 = vld [vmem:[%s2 + $0x2f0] sm:$0xff]
        %v381 = vld [vmem:[%s2 + $0x2f8] sm:$0xff]
        %v382 = vld [vmem:[%s2 + $0x300] sm:$0xff]
        %v383 = vld [vmem:[%s2 + $0x308] sm:$0xff]
        %v384 = vld [vmem:[%s2 + $0x310] sm:$0xff]
        %v385 = vld [vmem:[%s2 + $0x318] sm:$0xff]
        %v386 = vld [vmem:[%s2 + $0x320] sm:$0xff]
        %v387 = vld [vmem:[%s2 + $0x328] sm:$0xff]
        %v388 = vld [vmem:[%s2 + $0x330] sm:$0xff]
        %v389 = vld [vmem:[%s2 + $0x338] sm:$0xff]
        %v390 = vld [vmem:[%s2 + $0x340] sm:$0xff]
        %v391 = vld [vmem:[%s2 + $0x348] sm:$0xff]
        %v392 = vld [vmem:[%s2 + $0x350] sm:$0xff]
        %v393 = vld [vmem:[%s2 + $0x358] sm:$0xff]
        %v394 = vld [vmem:[%s2 + $0x360] sm:$0xff]
        %v395 = vld [vmem:[%s2 + $0x368] sm:$0xff]
        %v396 = vld [vmem:[%s2 + $0x370] sm:$0xff]
        %v397 = vld [vmem:[%s2 + $0x378] sm:$0xff]
        %v398 = vld [vmem:[%s2 + $0x380] sm:$0xff]
        %v399 = vld [vmem:[%s2 + $0x388] sm:$0xff]
        %v400 = vld [vmem:[%s2 + $0x390] sm:$0xff]
        %v401 = vld [vmem:[%s2 + $0x398] sm:$0xff]
        %v402 = vld [vmem:[%s2 + $0x3a0] sm:$0xff]
        %v403 = vld [vmem:[%s2 + $0x3a8] sm:$0xff]
        %v404 = vld [vmem:[%s2 + $0x3b0] sm:$0xff]
        %v405 = vld [vmem:[%s2 + $0x3b8] sm:$0xff]
        %v406 = vld [vmem:[%s2 + $0x3c0] sm:$0xff]
        %v407 = vld [vmem:[%s2 + $0x3c8] sm:$0xff]
        %v408 = vld [vmem:[%s2 + $0x3d0] sm:$0xff]
        %v409 = vld [vmem:[%s2 + $0x3d8] sm:$0xff]
        %v410 = vld [vmem:[%s2 + $0x3e0] sm:$0xff]
        %v411 = vld [vmem:[%s2 + $0x3e8] sm:$0xff]
        %v412 = vld [vmem:[%s2 + $0x3f0] sm:$0xff]
        %v413 = vld [vmem:[%s2 + $0x3f8] sm:$0xff]
        %v414 = vld [vmem:[%s2 + $0x400] sm:$0xff]
        %v415 = vld [vmem:[%s2 + $0x408] sm:$0xff]
        %v416 = vld [vmem:[%s2 + $0x410] sm:$0xff]
        %v417 = vld [vmem:[%s2 + $0x418] sm:$0xff]
        %v418 = vld [vmem:[%s2 + $0x420] sm:$0xff]
        %v419 = vld [vmem:[%s2 + $0x428] sm:$0xff]
        %v420 = vld [vmem:[%s2 + $0x430] sm:$0xff]
        %v421 = vld [vmem:[%s2 + $0x438] sm:$0xff]
        %v422 = vld [vmem:[%s2 + $0x440] sm:$0xff]
        %v423 = vld [vmem:[%s2 + $0x448] sm:$0xff]
        %v424 = vld [vmem:[%s2 + $0x450] sm:$0xff]
        %v425 = vld [vmem:[%s2 + $0x458] sm:$0xff]
        %v426 = vld [vmem:[%s2 + $0x460] sm:$0xff]
        %v427 = vld [vmem:[%s2 + $0x468] sm:$0xff]
        %v428 = vld [vmem:[%s2 + $0x470] sm:$0xff]
        %v429 = vld [vmem:[%s2 + $0x478] sm:$0xff]
        %v430 = vld [vmem:[%s2 + $0x480] sm:$0xff]
        %v431 = vld [vmem:[%s2 + $0x488] sm:$0xff]
        %v432 = vld [vmem:[%s2 + $0x490] sm:$0xff]
        %v433 = vld [vmem:[%s2 + $0x498] sm:$0xff]
        %v434 = vld [vmem:[%s2 + $0x4a0] sm:$0xff]
        %v435 = vld [vmem:[%s2 + $0x4a8] sm:$0xff]
        %v436 = vld [vmem:[%s2 + $0x4b0] sm:$0xff]
        %v437 = vld [vmem:[%s2 + $0x4b8] sm:$0xff]
        %v438 = vld [vmem:[%s2 + $0x4c0] sm:$0xff]
        %v439 = vld [vmem:[%s2 + $0x4c8] sm:$0xff]
        %v440 = vld [vmem:[%s2 + $0x4d0] sm:$0xff]
        %v441 = vld [vmem:[%s2 + $0x4d8] sm:$0xff]
        %v442 = vld [vmem:[%s2 + $0x4e0] sm:$0xff]
        %v443 = vld [vmem:[%s2 + $0x4e8] sm:$0xff]
        %v444 = vld [vmem:[%s2 + $0x4f0] sm:$0xff]
        %v445 = vld [vmem:[%s2 + $0x4f8] sm:$0xff]
        %v446 = vld [vmem:[%s2 + $0x500] sm:$0xff]
        %v447 = vld [vmem:[%s2 + $0x508] sm:$0xff]
        %v448 = vld [vmem:[%s2 + $0x510] sm:$0xff]
        %v449 = vld [vmem:[%s2 + $0x518] sm:$0xff]
        %v450 = vld [vmem:[%s2 + $0x520] sm:$0xff]
        %v451 = vld [vmem:[%s2 + $0x528] sm:$0xff]
        %v452 = vld [vmem:[%s2 + $0x530] sm:$0xff]
        %v453 = vld [vmem:[%s2 + $0x538] sm:$0xff]
        %v454 = vld [vmem:[%s2 + $0x540] sm:$0xff]
        %v455 = vld [vmem:[%s2 + $0x548] sm:$0xff]
        %v456 = vld [vmem:[%s2 + $0x550] sm:$0xff]
        %v457 = vld [vmem:[%s2 + $0x558] sm:$0xff]
        %v458 = vld [vmem:[%s2 + $0x560] sm:$0xff]
        %v459 = vld [vmem:[%s2 + $0x568] sm:$0xff]
        %v460 = vld [vmem:[%s2 + $0x570] sm:$0xff]
        %v461 = vld [vmem:[%s2 + $0x578] sm:$0xff]
        %v462 = vld [vmem:[%s2 + $0x580] sm:$0xff]
        %v463 = vld [vmem:[%s2 + $0x588] sm:$0xff]
        %v464 = vld [vmem:[%s2 + $0x590] sm:$0xff]
        %v465 = vld [vmem:[%s2 + $0x598] sm:$0xff]
        %v466 = vld [vmem:[%s2 + $0x5a0] sm:$0xff]
        %v467 = vld [vmem:[%s2 + $0x5a8] sm:$0xff]
        %v468 = vld [vmem:[%s2 + $0x5b0] sm:$0xff]
        %v469 = vld [vmem:[%s2 + $0x5b8] sm:$0xff]
        %v470 = vld [vmem:[%s2 + $0x5c0] sm:$0xff]
        %v471 = vld [vmem:[%s2 + $0x5c8] sm:$0xff]
        %v472 = vld [vmem:[%s2 + $0x5d0] sm:$0xff]
        %v473 = vld [vmem:[%s2 + $0x5d8] sm:$0xff]
        %v474 = vld [vmem:[%s2 + $0x5e0] sm:$0xff]
        %v475 = vld [vmem:[%s2 + $0x5e8] sm:$0xff]
        %v476 = vld [vmem:[%s2 + $0x5f0] sm:$0xff]
        %v477 = vld [vmem:[%s2 + $0x5f8] sm:$0xff]
        %v478 = vld [vmem:[%s2 + $0x600] sm:$0xff]
        %v479 = vld [vmem:[%s2 + $0x608] sm:$0xff]
        %v480 = vld [vmem:[%s2 + $0x610] sm:$0xff]
        %v481 = vld [vmem:[%s2 + $0x618] sm:$0xff]
        %v482 = vld [vmem:[%s2 + $0x620] sm:$0xff]
        %v483 = vld [vmem:[%s2 + $0x628] sm:$0xff]
        %v484 = vld [vmem:[%s2 + $0x630] sm:$0xff]
        %v485 = vld [vmem:[%s2 + $0x638] sm:$0xff]
        %v486 = vld [vmem:[%s2 + $0x640] sm:$0xff]
        %v487 = vld [vmem:[%s2 + $0x648] sm:$0xff]
        %v488 = vld [vmem:[%s2 + $0x650] sm:$0xff]
        %v489 = vld [vmem:[%s2 + $0x658] sm:$0xff]
        %v490 = vld [vmem:[%s2 + $0x660] sm:$0xff]
        %v491 = vld [vmem:[%s2 + $0x668] sm:$0xff]
        %v492 = vld [vmem:[%s2 + $0x670] sm:$0xff]
        %v493 = vld [vmem:[%s2 + $0x678] sm:$0xff]
        %v494 = vld [vmem:[%s2 + $0x680] sm:$0xff]
        %v495 = vld [vmem:[%s2 + $0x688] sm:$0xff]
        %v496 = vld [vmem:[%s2 + $0x690] sm:$0xff]
        %v497 = vld [vmem:[%s2 + $0x698] sm:$0xff]
        %v498 = vld [vmem:[%s2 + $0x6a0] sm:$0xff]
        %v499 = vld [vmem:[%s2 + $0x6a8] sm:$0xff]
        %v500 = vld [vmem:[%s2 + $0x6b0] sm:$0xff]
        %v501 = vld [vmem:[%s2 + $0x6b8] sm:$0xff]
        %v502 = vld [vmem:[%s2 + $0x6c0] sm:$0xff]
        %v503 = vld [vmem:[%s2 + $0x6c8] sm:$0xff]
        %v504 = vld [vmem:[%s2 + $0x6d0] sm:$0xff]
        %v505 = vld [vmem:[%s2 + $0x6d8] sm:$0xff]
        %v506 = vld [vmem:[%s2 + $0x6e0] sm:$0xff]
        %v507 = vld [vmem:[%s2 + $0x6e8] sm:$0xff]
        %v508 = vld [vmem:[%s2 + $0x6f0] sm:$0xff]
        %v509 = vld [vmem:[%s2 + $0x6f8] sm:$0xff]
        %v510 = vld [vmem:[%s2 + $0x700] sm:$0xff]
        %v511 = vld [vmem:[%s2 + $0x708] sm:$0xff]
        %v512 = vld [vmem:[%s2 + $0x710] sm:$0xff]
        %v513 = vld [vmem:[%s2 + $0x718] sm:$0xff]
        %v514 = vld [vmem:[%s2 + $0x720] sm:$0xff]
        %v515 = vld [vmem:[%s2 + $0x728] sm:$0xff]
        %v516 = vld [vmem:[%s2 + $0x730] sm:$0xff]
        %v517 = vld [vmem:[%s2 + $0x738] sm:$0xff]
        %v518 = vld [vmem:[%s2 + $0x740] sm:$0xff]
        %v519 = vld [vmem:[%s2 + $0x748] sm:$0xff]
        %v520 = vld [vmem:[%s2 + $0x750] sm:$0xff]
        %v521 = vld [vmem:[%s2 + $0x758] sm:$0xff]
        %v522 = vld [vmem:[%s2 + $0x760] sm:$0xff]
        %v523 = vld [vmem:[%s2 + $0x768] sm:$0xff]
        %v524 = vld [vmem:[%s2 + $0x770] sm:$0xff]
        %v525 = vld [vmem:[%s2 + $0x778] sm:$0xff]
        %v526 = vld [vmem:[%s2 + $0x780] sm:$0xff]
        %v527 = vld [vmem:[%s2 + $0x788] sm:$0xff]
        %v528 = vld [vmem:[%s2 + $0x790] sm:$0xff]
        %v529 = vld [vmem:[%s2 + $0x798] sm:$0xff]
        %v530 = vld [vmem:[%s2 + $0x7a0] sm:$0xff]
        %v531 = vld [vmem:[%s2 + $0x7a8] sm:$0xff]
        %v532 = vld [vmem:[%s2 + $0x7b0] sm:$0xff]
        %v533 = vld [vmem:[%s2 + $0x7b8] sm:$0xff]
        %v534 = vld [vmem:[%s2 + $0x7c0] sm:$0xff]
        %v535 = vld [vmem:[%s2 + $0x7c8] sm:$0xff]
        %v536 = vld [vmem:[%s2 + $0x7d0] sm:$0xff]
        %v537 = vld [vmem:[%s2 + $0x7d8] sm:$0xff]
        %v538 = vld [vmem:[%s2 + $0x7e0] sm:$0xff]
        %v539 = vld [vmem:[%s2 + $0x7e8] sm:$0xff]
        %v540 = vld [vmem:[%s2 + $0x7f0] sm:$0xff]
        %v541 = vld [vmem:[%s2 + $0x7f8] sm:$0xff]
        %v542 = vld [vmem:[%s2 + $0x800] sm:$0xff]
        %v543 = vld [vmem:[%s2 + $0x808] sm:$0xff]
        %v544 = vld [vmem:[%s2 + $0x810] sm:$0xff]
        %v545 = vld [vmem:[%s2 + $0x818] sm:$0xff]
        %v546 = vld [vmem:[%s2 + $0x820] sm:$0xff]
        %v547 = vld [vmem:[%s2 + $0x828] sm:$0xff]
        %v548 = vld [vmem:[%s2 + $0x830] sm:$0xff]
        %v549 = vld [vmem:[%s2 + $0x838] sm:$0xff]
        %v550 = vld [vmem:[%s2 + $0x840] sm:$0xff]
        %v551 = vld [vmem:[%s2 + $0x848] sm:$0xff]
        %v552 = vld [vmem:[%s2 + $0x850] sm:$0xff]
        %v553 = vld [vmem:[%s2 + $0x858] sm:$0xff]
        %v554 = vld [vmem:[%s2 + $0x860] sm:$0xff]
        %v555 = vld [vmem:[%s2 + $0x868] sm:$0xff]
        %v556 = vld [vmem:[%s2 + $0x870] sm:$0xff]
        %v557 = vld [vmem:[%s2 + $0x878] sm:$0xff]
        %v558 = vld [vmem:[%s2 + $0x880] sm:$0xff]
        %v559 = vld [vmem:[%s2 + $0x888] sm:$0xff]
        %v560 = vld [vmem:[%s2 + $0x890] sm:$0xff]
        %v561 = vld [vmem:[%s2 + $0x898] sm:$0xff]
        %v562 = vld [vmem:[%s2 + $0x8a0] sm:$0xff]
        %v563 = vld [vmem:[%s2 + $0x8a8] sm:$0xff]
        %v564 = vld [vmem:[%s2 + $0x8b0] sm:$0xff]
        %v565 = vld [vmem:[%s2 + $0x8b8] sm:$0xff]
        %v566 = vld [vmem:[%s2 + $0x8c0] sm:$0xff]
        %v567 = vld [vmem:[%s2 + $0x8c8] sm:$0xff]
        %v568 = vld [vmem:[%s2 + $0x8d0] sm:$0xff]
        %v569 = vld [vmem:[%s2 + $0x8d8] sm:$0xff]
        %v570 = vld [vmem:[%s2 + $0x8e0] sm:$0xff]
        %v571 = vld [vmem:[%s2 + $0x8e8] sm:$0xff]
        %v572 = vld [vmem:[%s2 + $0x8f0] sm:$0xff]
        %v573 = vld [vmem:[%s2 + $0x8f8] sm:$0xff]
        %v574 = vld [vmem:[%s2 + $0x900] sm:$0xff]
        %v575 = vld [vmem:[%s2 + $0x908] sm:$0xff]
        %v576 = vld [vmem:[%s2 + $0x910] sm:$0xff]
        %v577 = vld [vmem:[%s2 + $0x918] sm:$0xff]
        %v578 = vld [vmem:[%s2 + $0x920] sm:$0xff]
        %v579 = vld [vmem:[%s2 + $0x928] sm:$0xff]
        %v580 = vld [vmem:[%s2 + $0x930] sm:$0xff]
        %v581 = vld [vmem:[%s2 + $0x938] sm:$0xff]
        %v582 = vld [vmem:[%s2 + $0x940] sm:$0xff]
        %v583 = vld [vmem:[%s2 + $0x948] sm:$0xff]
        %v584 = vld [vmem:[%s2 + $0x950] sm:$0xff]
        %v585 = vld [vmem:[%s2 + $0x958] sm:$0xff]
        %v586 = vld [vmem:[%s2 + $0x960] sm:$0xff]
        %v587 = vld [vmem:[%s2 + $0x968] sm:$0xff]
        %v588 = vld [vmem:[%s2 + $0x970] sm:$0xff]
        %v589 = vld [vmem:[%s2 + $0x978] sm:$0xff]
        %v590 = vld [vmem:[%s2 + $0x980] sm:$0xff]
        %v591 = vld [vmem:[%s2 + $0x988] sm:$0xff]
        %v592 = vld [vmem:[%s2 + $0x990] sm:$0xff]
        %v593 = vld [vmem:[%s2 + $0x998] sm:$0xff]
        %v594 = vld [vmem:[%s2 + $0x9a0] sm:$0xff]
        %v595 = vld [vmem:[%s2 + $0x9a8] sm:$0xff]
        %v596 = vld [vmem:[%s2 + $0x9b0] sm:$0xff]
        %v597 = vld [vmem:[%s2 + $0x9b8] sm:$0xff]
        %v598 = vld [vmem:[%s2 + $0x9c0] sm:$0xff]
        %v599 = vld [vmem:[%s2 + $0x9c8] sm:$0xff]
        %v600 = vld [vmem:[%s2 + $0x9d0] sm:$0xff]
        %v601 = vld [vmem:[%s2 + $0x9d8] sm:$0xff]
        %v602 = vld [vmem:[%s2 + $0x9e0] sm:$0xff]
        %v603 = vld [vmem:[%s2 + $0x9e8] sm:$0xff]
        %v604 = vld [vmem:[%s2 + $0x9f0] sm:$0xff]
        %v605 = vld [vmem:[%s2 + $0x9f8] sm:$0xff]
        %v606 = vld [vmem:[%s283] sm:$0xff]
        %v607 = vld [vmem:[%s3] sm:$0xff]
        %v608 = vld [vmem:[%s3 + $0x8] sm:$0xff]
        %v609 = vld [vmem:[%s3 + $0x10] sm:$0xff]
        %v610 = vld [vmem:[%s3 + $0x18] sm:$0xff]
        %v611 = vld [vmem:[%s3 + $0x20] sm:$0xff]
        %v612 = vld [vmem:[%s3 + $0x28] sm:$0xff]
        %v613 = vld [vmem:[%s3 + $0x30] sm:$0xff]
        %v614 = vld [vmem:[%s3 + $0x38] sm:$0xff]
        %v615 = vld [vmem:[%s3 + $0x40] sm:$0xff]
        %v616 = vld [vmem:[%s3 + $0x48] sm:$0xff]
        %v617 = vld [vmem:[%s3 + $0x50] sm:$0xff]
        %v618 = vld [vmem:[%s3 + $0x58] sm:$0xff]
        %v619 = vld [vmem:[%s3 + $0x60] sm:$0xff]
        %v620 = vld [vmem:[%s3 + $0x68] sm:$0xff]
        %v621 = vld [vmem:[%s3 + $0x70] sm:$0xff]
        %v622 = vld [vmem:[%s3 + $0x78] sm:$0xff]
        %v623 = vld [vmem:[%s3 + $0x80] sm:$0xff]
        %v624 = vld [vmem:[%s3 + $0x88] sm:$0xff]
        %v625 = vld [vmem:[%s3 + $0x90] sm:$0xff]
        %v626 = vld [vmem:[%s3 + $0x98] sm:$0xff]
        %v627 = vld [vmem:[%s3 + $0xa0] sm:$0xff]
        %v628 = vld [vmem:[%s3 + $0xa8] sm:$0xff]
        %v629 = vld [vmem:[%s3 + $0xb0] sm:$0xff]
        %v630 = vld [vmem:[%s3 + $0xb8] sm:$0xff]
        %v631 = vld [vmem:[%s3 + $0xc0] sm:$0xff]
        %v632 = vld [vmem:[%s3 + $0xc8] sm:$0xff]
        %v633 = vld [vmem:[%s3 + $0xd0] sm:$0xff]
        %v634 = vld [vmem:[%s3 + $0xd8] sm:$0xff]
        %v635 = vld [vmem:[%s3 + $0xe0] sm:$0xff]
        %v636 = vld [vmem:[%s3 + $0xe8] sm:$0xff]
        %v637 = vld [vmem:[%s3 + $0xf0] sm:$0xff]
        %v638 = vld [vmem:[%s3 + $0xf8] sm:$0xff]
        %v639 = vld [vmem:[%s3 + $0x100] sm:$0xff]
        %v640 = vld [vmem:[%s3 + $0x108] sm:$0xff]
        %v641 = vld [vmem:[%s3 + $0x110] sm:$0xff]
        %v642 = vld [vmem:[%s3 + $0x118] sm:$0xff]
        %v643 = vld [vmem:[%s3 + $0x120] sm:$0xff]
        %v644 = vld [vmem:[%s3 + $0x128] sm:$0xff]
        %v645 = vld [vmem:[%s3 + $0x130] sm:$0xff]
        %v646 = vld [vmem:[%s3 + $0x138] sm:$0xff]
        %v647 = vld [vmem:[%s3 + $0x140] sm:$0xff]
        %v648 = vld [vmem:[%s3 + $0x148] sm:$0xff]
        %v649 = vld [vmem:[%s3 + $0x150] sm:$0xff]
        %v650 = vld [vmem:[%s3 + $0x158] sm:$0xff]
        %v651 = vld [vmem:[%s3 + $0x160] sm:$0xff]
        %v652 = vld [vmem:[%s3 + $0x168] sm:$0xff]
        %v653 = vld [vmem:[%s3 + $0x170] sm:$0xff]
        %v654 = vld [vmem:[%s3 + $0x178] sm:$0xff]
        %v655 = vld [vmem:[%s3 + $0x180] sm:$0xff]
        %v656 = vld [vmem:[%s3 + $0x188] sm:$0xff]
        %v657 = vld [vmem:[%s3 + $0x190] sm:$0xff]
        %v658 = vld [vmem:[%s3 + $0x198] sm:$0xff]
        %v659 = vld [vmem:[%s3 + $0x1a0] sm:$0xff]
        %v660 = vld [vmem:[%s3 + $0x1a8] sm:$0xff]
        %v661 = vld [vmem:[%s3 + $0x1b0] sm:$0xff]
        %v662 = vld [vmem:[%s3 + $0x1b8] sm:$0xff]
        %v663 = vld [vmem:[%s3 + $0x1c0] sm:$0xff]
        %v664 = vld [vmem:[%s3 + $0x1c8] sm:$0xff]
        %v665 = vld [vmem:[%s3 + $0x1d0] sm:$0xff]
        %v666 = vld [vmem:[%s3 + $0x1d8] sm:$0xff]
        %v667 = vld [vmem:[%s3 + $0x1e0] sm:$0xff]
        %v668 = vld [vmem:[%s3 + $0x1e8] sm:$0xff]
        %v669 = vld [vmem:[%s3 + $0x1f0] sm:$0xff]
        %v670 = vld [vmem:[%s3 + $0x1f8] sm:$0xff]
        %v671 = vld [vmem:[%s3 + $0x200] sm:$0xff]
        %v672 = vld [vmem:[%s3 + $0x208] sm:$0xff]
        %v673 = vld [vmem:[%s3 + $0x210] sm:$0xff]
        %v674 = vld [vmem:[%s3 + $0x218] sm:$0xff]
        %v675 = vld [vmem:[%s3 + $0x220] sm:$0xff]
        %v676 = vld [vmem:[%s3 + $0x228] sm:$0xff]
        %v677 = vld [vmem:[%s3 + $0x230] sm:$0xff]
        %v678 = vld [vmem:[%s3 + $0x238] sm:$0xff]
        %v679 = vld [vmem:[%s3 + $0x240] sm:$0xff]
        %v680 = vld [vmem:[%s3 + $0x248] sm:$0xff]
        %v681 = vld [vmem:[%s3 + $0x250] sm:$0xff]
        %v682 = vld [vmem:[%s3 + $0x258] sm:$0xff]
        %v683 = vld [vmem:[%s3 + $0x260] sm:$0xff]
        %v684 = vld [vmem:[%s3 + $0x268] sm:$0xff]
        %v685 = vld [vmem:[%s3 + $0x270] sm:$0xff]
        %v686 = vld [vmem:[%s3 + $0x278] sm:$0xff]
        %v687 = vld [vmem:[%s3 + $0x280] sm:$0xff]
        %v688 = vld [vmem:[%s3 + $0x288] sm:$0xff]
        %v689 = vld [vmem:[%s3 + $0x290] sm:$0xff]
        %v690 = vld [vmem:[%s3 + $0x298] sm:$0xff]
        %v691 = vld [vmem:[%s3 + $0x2a0] sm:$0xff]
        %v692 = vld [vmem:[%s3 + $0x2a8] sm:$0xff]
        %v693 = vld [vmem:[%s3 + $0x2b0] sm:$0xff]
        %v694 = vld [vmem:[%s3 + $0x2b8] sm:$0xff]
        %v695 = vld [vmem:[%s3 + $0x2c0] sm:$0xff]
        %v696 = vld [vmem:[%s3 + $0x2c8] sm:$0xff]
        %v697 = vld [vmem:[%s3 + $0x2d0] sm:$0xff]
        %v698 = vld [vmem:[%s3 + $0x2d8] sm:$0xff]
        %v699 = vld [vmem:[%s3 + $0x2e0] sm:$0xff]
        %v700 = vld [vmem:[%s3 + $0x2e8] sm:$0xff]
        %v701 = vld [vmem:[%s3 + $0x2f0] sm:$0xff]
        %v702 = vld [vmem:[%s3 + $0x2f8] sm:$0xff]
        %v703 = vld [vmem:[%s3 + $0x300] sm:$0xff]
        %v704 = vld [vmem:[%s3 + $0x308] sm:$0xff]
        %v705 = vld [vmem:[%s3 + $0x310] sm:$0xff]
        %v706 = vld [vmem:[%s3 + $0x318] sm:$0xff]
        %v707 = vld [vmem:[%s3 + $0x320] sm:$0xff]
        %v708 = vld [vmem:[%s3 + $0x328] sm:$0xff]
        %v709 = vld [vmem:[%s3 + $0x330] sm:$0xff]
        %v710 = vld [vmem:[%s3 + $0x338] sm:$0xff]
        %v711 = vld [vmem:[%s3 + $0x340] sm:$0xff]
        %v712 = vld [vmem:[%s3 + $0x348] sm:$0xff]
        %v713 = vld [vmem:[%s3 + $0x350] sm:$0xff]
        %v714 = vld [vmem:[%s3 + $0x358] sm:$0xff]
        %v715 = vld [vmem:[%s3 + $0x360] sm:$0xff]
        %v716 = vld [vmem:[%s3 + $0x368] sm:$0xff]
        %v717 = vld [vmem:[%s3 + $0x370] sm:$0xff]
        %v718 = vld [vmem:[%s3 + $0x378] sm:$0xff]
        %v719 = vld [vmem:[%s3 + $0x380] sm:$0xff]
        %v720 = vld [vmem:[%s3 + $0x388] sm:$0xff]
        %v721 = vld [vmem:[%s3 + $0x390] sm:$0xff]
        %v722 = vld [vmem:[%s3 + $0x398] sm:$0xff]
        %v723 = vld [vmem:[%s3 + $0x3a0] sm:$0xff]
        %v724 = vld [vmem:[%s3 + $0x3a8] sm:$0xff]
        %v725 = vld [vmem:[%s3 + $0x3b0] sm:$0xff]
        %v726 = vld [vmem:[%s3 + $0x3b8] sm:$0xff]
        %v727 = vld [vmem:[%s3 + $0x3c0] sm:$0xff]
        %v728 = vld [vmem:[%s3 + $0x3c8] sm:$0xff]
        %v729 = vld [vmem:[%s3 + $0x3d0] sm:$0xff]
        %v730 = vld [vmem:[%s3 + $0x3d8] sm:$0xff]
        %v731 = vld [vmem:[%s3 + $0x3e0] sm:$0xff]
        %v732 = vld [vmem:[%s3 + $0x3e8] sm:$0xff]
        %v733 = vld [vmem:[%s3 + $0x3f0] sm:$0xff]
        %v734 = vld [vmem:[%s3 + $0x3f8] sm:$0xff]
        %v735 = vld [vmem:[%s3 + $0x400] sm:$0xff]
        %v736 = vld [vmem:[%s3 + $0x408] sm:$0xff]
        %v737 = vld [vmem:[%s3 + $0x410] sm:$0xff]
        %v738 = vld [vmem:[%s3 + $0x418] sm:$0xff]
        %v739 = vld [vmem:[%s3 + $0x420] sm:$0xff]
        %v740 = vld [vmem:[%s3 + $0x428] sm:$0xff]
        %v741 = vld [vmem:[%s3 + $0x430] sm:$0xff]
        %v742 = vld [vmem:[%s3 + $0x438] sm:$0xff]
        %v743 = vld [vmem:[%s3 + $0x440] sm:$0xff]
        %v744 = vld [vmem:[%s3 + $0x448] sm:$0xff]
        %v745 = vld [vmem:[%s3 + $0x450] sm:$0xff]
        %v746 = vld [vmem:[%s3 + $0x458] sm:$0xff]
        %v747 = vld [vmem:[%s3 + $0x460] sm:$0xff]
        %v748 = vld [vmem:[%s3 + $0x468] sm:$0xff]
        %v749 = vld [vmem:[%s3 + $0x470] sm:$0xff]
        %v750 = vld [vmem:[%s3 + $0x478] sm:$0xff]
        %v751 = vld [vmem:[%s3 + $0x480] sm:$0xff]
        %v752 = vld [vmem:[%s3 + $0x488] sm:$0xff]
        %v753 = vld [vmem:[%s3 + $0x490] sm:$0xff]
        %v754 = vld [vmem:[%s3 + $0x498] sm:$0xff]
        %v755 = vld [vmem:[%s3 + $0x4a0] sm:$0xff]
        %v756 = vld [vmem:[%s3 + $0x4a8] sm:$0xff]
        %v757 = vld [vmem:[%s3 + $0x4b0] sm:$0xff]
        %v758 = vld [vmem:[%s3 + $0x4b8] sm:$0xff]
        %v759 = vld [vmem:[%s3 + $0x4c0] sm:$0xff]
        %v760 = vld [vmem:[%s3 + $0x4c8] sm:$0xff]
        %v761 = vld [vmem:[%s3 + $0x4d0] sm:$0xff]
        %v762 = vld [vmem:[%s3 + $0x4d8] sm:$0xff]
        %v763 = vld [vmem:[%s3 + $0x4e0] sm:$0xff]
        %v764 = vld [vmem:[%s3 + $0x4e8] sm:$0xff]
        %v765 = vld [vmem:[%s3 + $0x4f0] sm:$0xff]
        %v766 = vld [vmem:[%s3 + $0x4f8] sm:$0xff]
        %v767 = vld [vmem:[%s3 + $0x500] sm:$0xff]
        %v768 = vld [vmem:[%s3 + $0x508] sm:$0xff]
        %v769 = vld [vmem:[%s3 + $0x510] sm:$0xff]
        %v770 = vld [vmem:[%s3 + $0x518] sm:$0xff]
        %v771 = vld [vmem:[%s3 + $0x520] sm:$0xff]
        %v772 = vld [vmem:[%s3 + $0x528] sm:$0xff]
        %v773 = vld [vmem:[%s3 + $0x530] sm:$0xff]
        %v774 = vld [vmem:[%s3 + $0x538] sm:$0xff]
        %v775 = vld [vmem:[%s3 + $0x540] sm:$0xff]
        %v776 = vld [vmem:[%s3 + $0x548] sm:$0xff]
        %v777 = vld [vmem:[%s3 + $0x550] sm:$0xff]
        %v778 = vld [vmem:[%s3 + $0x558] sm:$0xff]
        %v779 = vld [vmem:[%s3 + $0x560] sm:$0xff]
        %v780 = vld [vmem:[%s3 + $0x568] sm:$0xff]
        %v781 = vld [vmem:[%s3 + $0x570] sm:$0xff]
        %v782 = vld [vmem:[%s3 + $0x578] sm:$0xff]
        %v783 = vld [vmem:[%s3 + $0x580] sm:$0xff]
        %v784 = vld [vmem:[%s3 + $0x588] sm:$0xff]
        %v785 = vld [vmem:[%s3 + $0x590] sm:$0xff]
        %v786 = vld [vmem:[%s3 + $0x598] sm:$0xff]
        %v787 = vld [vmem:[%s3 + $0x5a0] sm:$0xff]
        %v788 = vld [vmem:[%s3 + $0x5a8] sm:$0xff]
        %v789 = vld [vmem:[%s3 + $0x5b0] sm:$0xff]
        %v790 = vld [vmem:[%s3 + $0x5b8] sm:$0xff]
        %v791 = vld [vmem:[%s3 + $0x5c0] sm:$0xff]
        %v792 = vld [vmem:[%s3 + $0x5c8] sm:$0xff]
        %v793 = vld [vmem:[%s3 + $0x5d0] sm:$0xff]
        %v794 = vld [vmem:[%s3 + $0x5d8] sm:$0xff]
        %v795 = vld [vmem:[%s3 + $0x5e0] sm:$0xff]
        %v796 = vld [vmem:[%s3 + $0x5e8] sm:$0xff]
        %v797 = vld [vmem:[%s3 + $0x5f0] sm:$0xff]
        %v798 = vld [vmem:[%s3 + $0x5f8] sm:$0xff]
        %v799 = vld [vmem:[%s3 + $0x600] sm:$0xff]
        %v800 = vld [vmem:[%s3 + $0x608] sm:$0xff]
        %v801 = vld [vmem:[%s3 + $0x610] sm:$0xff]
        %v802 = vld [vmem:[%s3 + $0x618] sm:$0xff]
        %v803 = vld [vmem:[%s3 + $0x620] sm:$0xff]
        %v804 = vld [vmem:[%s3 + $0x628] sm:$0xff]
        %v805 = vld [vmem:[%s3 + $0x630] sm:$0xff]
        %v806 = vld [vmem:[%s3 + $0x638] sm:$0xff]
        %v807 = vld [vmem:[%s3 + $0x640] sm:$0xff]
        %v808 = vld [vmem:[%s3 + $0x648] sm:$0xff]
        %v809 = vld [vmem:[%s3 + $0x650] sm:$0xff]
        %v810 = vld [vmem:[%s3 + $0x658] sm:$0xff]
        %v811 = vld [vmem:[%s3 + $0x660] sm:$0xff]
        %v812 = vld [vmem:[%s3 + $0x668] sm:$0xff]
        %v813 = vld [vmem:[%s3 + $0x670] sm:$0xff]
        %v814 = vld [vmem:[%s3 + $0x678] sm:$0xff]
        %v815 = vld [vmem:[%s3 + $0x680] sm:$0xff]
        %v816 = vld [vmem:[%s3 + $0x688] sm:$0xff]
        %v817 = vld [vmem:[%s3 + $0x690] sm:$0xff]
        %v818 = vld [vmem:[%s3 + $0x698] sm:$0xff]
        %v819 = vld [vmem:[%s3 + $0x6a0] sm:$0xff]
        %v820 = vld [vmem:[%s3 + $0x6a8] sm:$0xff]
        %v821 = vld [vmem:[%s3 + $0x6b0] sm:$0xff]
        %v822 = vld [vmem:[%s3 + $0x6b8] sm:$0xff]
        %v823 = vld [vmem:[%s3 + $0x6c0] sm:$0xff]
        %v824 = vld [vmem:[%s3 + $0x6c8] sm:$0xff]
        %v825 = vld [vmem:[%s3 + $0x6d0] sm:$0xff]
        %v826 = vld [vmem:[%s3 + $0x6d8] sm:$0xff]
        %v827 = vld [vmem:[%s3 + $0x6e0] sm:$0xff]
        %v828 = vld [vmem:[%s3 + $0x6e8] sm:$0xff]
        %v829 = vld [vmem:[%s3 + $0x6f0] sm:$0xff]
        %v830 = vld [vmem:[%s3 + $0x6f8] sm:$0xff]
        %v831 = vld [vmem:[%s3 + $0x700] sm:$0xff]
        %v832 = vld [vmem:[%s3 + $0x708] sm:$0xff]
        %v833 = vld [vmem:[%s3 + $0x710] sm:$0xff]
        %v834 = vld [vmem:[%s3 + $0x718] sm:$0xff]
        %v835 = vld [vmem:[%s3 + $0x720] sm:$0xff]
        %v836 = vld [vmem:[%s3 + $0x728] sm:$0xff]
        %v837 = vld [vmem:[%s3 + $0x730] sm:$0xff]
        %v838 = vld [vmem:[%s3 + $0x738] sm:$0xff]
        %v839 = vld [vmem:[%s3 + $0x740] sm:$0xff]
        %v840 = vld [vmem:[%s3 + $0x748] sm:$0xff]
        %v841 = vld [vmem:[%s3 + $0x750] sm:$0xff]
        %v842 = vld [vmem:[%s3 + $0x758] sm:$0xff]
        %v843 = vld [vmem:[%s3 + $0x760] sm:$0xff]
        %v844 = vld [vmem:[%s3 + $0x768] sm:$0xff]
        %v845 = vld [vmem:[%s3 + $0x770] sm:$0xff]
        %v846 = vld [vmem:[%s3 + $0x778] sm:$0xff]
        %v847 = vld [vmem:[%s3 + $0x780] sm:$0xff]
        %v848 = vld [vmem:[%s3 + $0x788] sm:$0xff]
        %v849 = vld [vmem:[%s3 + $0x790] sm:$0xff]
        %v850 = vld [vmem:[%s3 + $0x798] sm:$0xff]
        %v851 = vld [vmem:[%s3 + $0x7a0] sm:$0xff]
        %v852 = vld [vmem:[%s3 + $0x7a8] sm:$0xff]
        %v853 = vld [vmem:[%s3 + $0x7b0] sm:$0xff]
        %v854 = vld [vmem:[%s3 + $0x7b8] sm:$0xff]
        %v855 = vld [vmem:[%s3 + $0x7c0] sm:$0xff]
        %v856 = vld [vmem:[%s3 + $0x7c8] sm:$0xff]
        %v857 = vld [vmem:[%s3 + $0x7d0] sm:$0xff]
        %v858 = vld [vmem:[%s3 + $0x7d8] sm:$0xff]
        %v859 = vld [vmem:[%s3 + $0x7e0] sm:$0xff]
        %v860 = vld [vmem:[%s3 + $0x7e8] sm:$0xff]
        %v861 = vld [vmem:[%s3 + $0x7f0] sm:$0xff]
        %v862 = vld [vmem:[%s3 + $0x7f8] sm:$0xff]
        %v863 = vld [vmem:[%s3 + $0x800] sm:$0xff]
        %v864 = vld [vmem:[%s3 + $0x808] sm:$0xff]
        %v865 = vld [vmem:[%s3 + $0x810] sm:$0xff]
        %v866 = vld [vmem:[%s3 + $0x818] sm:$0xff]
        %v867 = vld [vmem:[%s3 + $0x820] sm:$0xff]
        %v868 = vld [vmem:[%s3 + $0x828] sm:$0xff]
        %v869 = vld [vmem:[%s3 + $0x830] sm:$0xff]
        %v870 = vld [vmem:[%s3 + $0x838] sm:$0xff]
        %v871 = vld [vmem:[%s3 + $0x840] sm:$0xff]
        %v872 = vld [vmem:[%s3 + $0x848] sm:$0xff]
        %v873 = vld [vmem:[%s3 + $0x850] sm:$0xff]
        %v874 = vld [vmem:[%s3 + $0x858] sm:$0xff]
        %v875 = vld [vmem:[%s3 + $0x860] sm:$0xff]
        %v876 = vld [vmem:[%s3 + $0x868] sm:$0xff]
        %v877 = vld [vmem:[%s3 + $0x870] sm:$0xff]
        %v878 = vld [vmem:[%s3 + $0x878] sm:$0xff]
        %v879 = vld [vmem:[%s3 + $0x880] sm:$0xff]
        %v880 = vld [vmem:[%s3 + $0x888] sm:$0xff]
        %v881 = vld [vmem:[%s3 + $0x890] sm:$0xff]
        %v882 = vld [vmem:[%s3 + $0x898] sm:$0xff]
        %v883 = vld [vmem:[%s3 + $0x8a0] sm:$0xff]
        %v884 = vld [vmem:[%s3 + $0x8a8] sm:$0xff]
        %v885 = vld [vmem:[%s3 + $0x8b0] sm:$0xff]
        %v886 = vld [vmem:[%s3 + $0x8b8] sm:$0xff]
        %v887 = vld [vmem:[%s3 + $0x8c0] sm:$0xff]
        %v888 = vld [vmem:[%s3 + $0x8c8] sm:$0xff]
        %v889 = vld [vmem:[%s3 + $0x8d0] sm:$0xff]
        %v890 = vld [vmem:[%s3 + $0x8d8] sm:$0xff]
        %v891 = vld [vmem:[%s3 + $0x8e0] sm:$0xff]
        %v892 = vld [vmem:[%s3 + $0x8e8] sm:$0xff]
        %v893 = vld [vmem:[%s3 + $0x8f0] sm:$0xff]
        %v894 = vld [vmem:[%s3 + $0x8f8] sm:$0xff]
        %v895 = vld [vmem:[%s3 + $0x900] sm:$0xff]
        %v896 = vld [vmem:[%s3 + $0x908] sm:$0xff]
        %v897 = vld [vmem:[%s3 + $0x910] sm:$0xff]
        %v898 = vld [vmem:[%s3 + $0x918] sm:$0xff]
        %v899 = vld [vmem:[%s3 + $0x920] sm:$0xff]
        %v900 = vld [vmem:[%s3 + $0x928] sm:$0xff]
        %v901 = vld [vmem:[%s3 + $0x930] sm:$0xff]
        %v902 = vld [vmem:[%s3 + $0x938] sm:$0xff]
        %v903 = vld [vmem:[%s3 + $0x940] sm:$0xff]
        %v904 = vld [vmem:[%s3 + $0x948] sm:$0xff]
        %v905 = vld [vmem:[%s3 + $0x950] sm:$0xff]
        %v906 = vld [vmem:[%s3 + $0x958] sm:$0xff]
        %v907 = vld [vmem:[%s3 + $0x960] sm:$0xff]
        %v908 = vld [vmem:[%s3 + $0x968] sm:$0xff]
        %v909 = vld [vmem:[%s3 + $0x970] sm:$0xff]
        %v910 = vld [vmem:[%s3 + $0x978] sm:$0xff]
        %v911 = vld [vmem:[%s3 + $0x980] sm:$0xff]
        %v912 = vld [vmem:[%s3 + $0x988] sm:$0xff]
        %v913 = vld [vmem:[%s3 + $0x990] sm:$0xff]
        %v914 = vld [vmem:[%s3 + $0x998] sm:$0xff]
        %v915 = vld [vmem:[%s3 + $0x9a0] sm:$0xff]
        %v916 = vld [vmem:[%s3 + $0x9a8] sm:$0xff]
        %v917 = vld [vmem:[%s3 + $0x9b0] sm:$0xff]
        %v918 = vld [vmem:[%s3 + $0x9b8] sm:$0xff]
        %v919 = vld [vmem:[%s3 + $0x9c0] sm:$0xff]
        %v920 = vld [vmem:[%s3 + $0x9c8] sm:$0xff]
        %v921 = vld [vmem:[%s3 + $0x9d0] sm:$0xff]
        %v922 = vld [vmem:[%s3 + $0x9d8] sm:$0xff]
        %v923 = vld [vmem:[%s3 + $0x9e0] sm:$0xff]
        %v924 = vld [vmem:[%s3 + $0x9e8] sm:$0xff]
        %v925 = vld [vmem:[%s3 + $0x9f0] sm:$0xff]
        %v926 = vld [vmem:[%s3 + $0x9f8] sm:$0xff]
        %v928 = vcombine.high %v606, %v606
        %v930 = vunpack.c.l.s4 1983009808
        %v931 = vunpack.c.0.s8 %v930
        %v932 = vlaneseq
        %v933 = vshrl.u32 %v932, 7
        %v934 = vsub.s32 %v931, %v933
        %v935 = vrot.slane %v606, %v934
        %v937 = vunpack.c.l.s4 1983009808
        %v938 = vunpack.c.0.s8 %v937
        %v939 = vlaneseq
        %v940 = vshrl.u32 %v939, 7
        %v941 = vsub.s32 %v938, %v940
        %v942 = vrot.slane %v928, %v941
        %v943 = vcombine.high %v935, %v935
        %v944 = vcombine.high %v942, %v942
        %949 = vmatprep.subr.mxu0 %v608
        %950 = vmatpush1.msra.mxu0 %v607
        %951 = vmatprep.subr.mxu0 %v613
        %952 = vmatpush1.msra.mxu0 %v612
        %953 = vmatprep.subr.mxu0 %v618
        %954 = vmatpush1.msra.mxu0 %v617
        %955 = vmatprep.subr.mxu0 %v623
        %956 = vmatpush1.msra.mxu0 %v622
        %957 = vmatprep.subr.mxu0 %v628
        %958 = vmatpush1.msra.mxu0 %v627
        %959 = vmatprep.subr.mxu0 %v633
        %960 = vmatpush1.msra.mxu0 %v632
        %961 = vmatprep.subr.mxu0 %v638
        %962 = vmatpush1.msra.mxu0 %v637
        %963 = vmatprep.subr.mxu0 %v643
        %964 = vmatpush1.msra.mxu0 %v642
        %965 = vmatprep.subr.mxu0 %v648
        %966 = vmatpush1.msra.mxu0 %v647
        %967 = vmatprep.subr.mxu0 %v653
        %968 = vmatpush1.msra.mxu0 %v652
        %969 = vmatprep.subr.mxu0 %v658
        %970 = vmatpush1.msra.mxu0 %v657
        %971 = vmatprep.subr.mxu0 %v663
        %972 = vmatpush1.msra.mxu0 %v662
        %973 = vmatprep.subr.mxu0 %v668
        %974 = vmatpush1.msra.mxu0 %v667
        %975 = vmatprep.subr.mxu0 %v673
        %976 = vmatpush1.msra.mxu0 %v672
        %977 = vmatprep.subr.mxu0 %v678
        %978 = vmatpush1.msra.mxu0 %v677
        %979 = vmatprep.subr.mxu0 %v683
        %980 = vmatpush1.msra.mxu0 %v682
        %981 = vmatprep.subr.mxu0 %v688
        %982 = vmatpush1.msra.mxu0 %v687
        %983 = vmatprep.subr.mxu0 %v693
        %984 = vmatpush1.msra.mxu0 %v692
        %985 = vmatprep.subr.mxu0 %v698
        %986 = vmatpush1.msra.mxu0 %v697
        %987 = vmatprep.subr.mxu0 %v703
        %988 = vmatpush1.msra.mxu0 %v702
        %989 = vmatprep.subr.mxu0 %v708
        %990 = vmatpush1.msra.mxu0 %v707
        %991 = vmatprep.subr.mxu0 %v713
        %992 = vmatpush1.msra.mxu0 %v712
        %993 = vmatprep.subr.mxu0 %v718
        %994 = vmatpush1.msra.mxu0 %v717
        %995 = vmatprep.subr.mxu0 %v723
        %996 = vmatpush1.msra.mxu0 %v722
        %997 = vmatprep.subr.mxu0 %v728
        %998 = vmatpush1.msra.mxu0 %v727
        %999 = vmatprep.subr.mxu0 %v733
        %1000 = vmatpush1.msra.mxu0 %v732
        %1001 = vmatprep.subr.mxu0 %v738
        %1002 = vmatpush1.msra.mxu0 %v737
        %1003 = vmatprep.subr.mxu0 %v743
        %1004 = vmatpush1.msra.mxu0 %v742
        %1005 = vmatprep.subr.mxu0 %v748
        %1006 = vmatpush1.msra.mxu0 %v747
        %1007 = vmatprep.subr.mxu0 %v753
        %1008 = vmatpush1.msra.mxu0 %v752
        %1009 = vmatprep.subr.mxu0 %v758
        %1010 = vmatpush1.msra.mxu0 %v757
        %1011 = vmatprep.subr.mxu0 %v763
        %1012 = vmatpush1.msra.mxu0 %v762
        %1013 = vmatprep.mubr.f32.mxu0 %v943
        %1014 = vmatmul.mubr.f32.gmra.mrb[0].mxu0 %v935
        %v1015 = vpop.f32.mrb[0].mxu0
        %v1016 = vadd.f32 0.0, %v1015
        %v1017 = vpop.f32.mrb[0].mxu0
        %v1018 = vadd.f32 0.0, %v1017
        %1019 = vdwg.mxu0
        %1020 = vmatprep.subr.mxu0 %v768
        %1021 = vmatpush1.msra.mxu0 %v767
        %1022 = vmatprep.subr.mxu0 %v773
        %1023 = vmatpush1.msra.mxu0 %v772
        %1024 = vmatprep.subr.mxu0 %v778
        %1025 = vmatpush1.msra.mxu0 %v777
        %1026 = vmatprep.subr.mxu0 %v783
        %1027 = vmatpush1.msra.mxu0 %v782
        %1028 = vmatprep.subr.mxu0 %v788
        %1029 = vmatpush1.msra.mxu0 %v787
        %1030 = vmatprep.subr.mxu0 %v793
        %1031 = vmatpush1.msra.mxu0 %v792
        %1032 = vmatprep.subr.mxu0 %v798
        %1033 = vmatpush1.msra.mxu0 %v797
        %1034 = vmatprep.subr.mxu0 %v803
        %1035 = vmatpush1.msra.mxu0 %v802
        %1036 = vmatprep.subr.mxu0 %v808
        %1037 = vmatpush1.msra.mxu0 %v807
        %1038 = vmatprep.subr.mxu0 %v813
        %1039 = vmatpush1.msra.mxu0 %v812
        %1040 = vmatprep.subr.mxu0 %v818
        %1041 = vmatpush1.msra.mxu0 %v817
        %1042 = vmatprep.subr.mxu0 %v823
        %1043 = vmatpush1.msra.mxu0 %v822
        %1044 = vmatprep.subr.mxu0 %v828
        %1045 = vmatpush1.msra.mxu0 %v827
        %1046 = vmatprep.subr.mxu0 %v833
        %1047 = vmatpush1.msra.mxu0 %v832
        %1048 = vmatprep.subr.mxu0 %v838
        %1049 = vmatpush1.msra.mxu0 %v837
        %1050 = vmatprep.subr.mxu0 %v843
        %1051 = vmatpush1.msra.mxu0 %v842
        %1052 = vmatprep.subr.mxu0 %v848
        %1053 = vmatpush1.msra.mxu0 %v847
        %1054 = vmatprep.subr.mxu0 %v853
        %1055 = vmatpush1.msra.mxu0 %v852
        %1056 = vmatprep.subr.mxu0 %v858
        %1057 = vmatpush1.msra.mxu0 %v857
        %1058 = vmatprep.subr.mxu0 %v863
        %1059 = vmatpush1.msra.mxu0 %v862
        %1060 = vmatprep.subr.mxu0 %v868
        %1061 = vmatpush1.msra.mxu0 %v867
        %1062 = vmatprep.subr.mxu0 %v873
        %1063 = vmatpush1.msra.mxu0 %v872
        %1064 = vmatprep.subr.mxu0 %v878
        %1065 = vmatpush1.msra.mxu0 %v877
        %1066 = vmatprep.subr.mxu0 %v883
        %1067 = vmatpush1.msra.mxu0 %v882
        %1068 = vmatprep.subr.mxu0 %v888
        %1069 = vmatpush1.msra.mxu0 %v887
        %1070 = vmatprep.subr.mxu0 %v893
        %1071 = vmatpush1.msra.mxu0 %v892
        %1072 = vmatprep.subr.mxu0 %v898
        %1073 = vmatpush1.msra.mxu0 %v897
        %1074 = vmatprep.subr.mxu0 %v903
        %1075 = vmatpush1.msra.mxu0 %v902
        %1076 = vmatprep.subr.mxu0 %v908
        %1077 = vmatpush1.msra.mxu0 %v907
        %1078 = vmatprep.subr.mxu0 %v913
        %1079 = vmatpush1.msra.mxu0 %v912
        %1080 = vmatprep.subr.mxu0 %v918
        %1081 = vmatpush1.msra.mxu0 %v917
        %1082 = vmatprep.subr.mxu0 %v923
        %1083 = vmatpush1.msra.mxu0 %v922
        %1084 = vmatprep.mubr.f32.mxu0 %v944
        %1085 = vmatmul.mubr.f32.gmra.mrb[0].mxu0 %v942
        %v1086 = vpop.f32.mrb[0].mxu0
        %v1087 = vadd.f32 %v1016, %v1086
        %v1088 = vpop.f32.mrb[0].mxu0
        %v1089 = vadd.f32 %v1018, %v1088
        %1090 = vdwg.mxu0
        %1091 = vmatprep.subr.mxu0 %v610
        %1092 = vmatpush1.msra.mxu0 %v609
        %1093 = vmatprep.subr.mxu0 %v615
        %1094 = vmatpush1.msra.mxu0 %v614
        %1095 = vmatprep.subr.mxu0 %v620
        %1096 = vmatpush1.msra.mxu0 %v619
        %1097 = vmatprep.subr.mxu0 %v625
        %1098 = vmatpush1.msra.mxu0 %v624
        %1099 = vmatprep.subr.mxu0 %v630
        %1100 = vmatpush1.msra.mxu0 %v629
        %1101 = vmatprep.subr.mxu0 %v635
        %1102 = vmatpush1.msra.mxu0 %v634
        %1103 = vmatprep.subr.mxu0 %v640
        %1104 = vmatpush1.msra.mxu0 %v639
        %1105 = vmatprep.subr.mxu0 %v645
        %1106 = vmatpush1.msra.mxu0 %v644
        %1107 = vmatprep.subr.mxu0 %v650
        %1108 = vmatpush1.msra.mxu0 %v649
        %1109 = vmatprep.subr.mxu0 %v655
        %1110 = vmatpush1.msra.mxu0 %v654
        %1111 = vmatprep.subr.mxu0 %v660
        %1112 = vmatpush1.msra.mxu0 %v659
        %1113 = vmatprep.subr.mxu0 %v665
        %1114 = vmatpush1.msra.mxu0 %v664
        %1115 = vmatprep.subr.mxu0 %v670
        %1116 = vmatpush1.msra.mxu0 %v669
        %1117 = vmatprep.subr.mxu0 %v675
        %1118 = vmatpush1.msra.mxu0 %v674
        %1119 = vmatprep.subr.mxu0 %v680
        %1120 = vmatpush1.msra.mxu0 %v679
        %1121 = vmatprep.subr.mxu0 %v685
        %1122 = vmatpush1.msra.mxu0 %v684
        %1123 = vmatprep.subr.mxu0 %v690
        %1124 = vmatpush1.msra.mxu0 %v689
        %1125 = vmatprep.subr.mxu0 %v695
        %1126 = vmatpush1.msra.mxu0 %v694
        %1127 = vmatprep.subr.mxu0 %v700
        %1128 = vmatpush1.msra.mxu0 %v699
        %1129 = vmatprep.subr.mxu0 %v705
        %1130 = vmatpush1.msra.mxu0 %v704
        %1131 = vmatprep.subr.mxu0 %v710
        %1132 = vmatpush1.msra.mxu0 %v709
        %1133 = vmatprep.subr.mxu0 %v715
        %1134 = vmatpush1.msra.mxu0 %v714
        %1135 = vmatprep.subr.mxu0 %v720
        %1136 = vmatpush1.msra.mxu0 %v719
        %1137 = vmatprep.subr.mxu0 %v725
        %1138 = vmatpush1.msra.mxu0 %v724
        %1139 = vmatprep.subr.mxu0 %v730
        %1140 = vmatpush1.msra.mxu0 %v729
        %1141 = vmatprep.subr.mxu0 %v735
        %1142 = vmatpush1.msra.mxu0 %v734
        %1143 = vmatprep.subr.mxu0 %v740
        %1144 = vmatpush1.msra.mxu0 %v739
        %1145 = vmatprep.subr.mxu0 %v745
        %1146 = vmatpush1.msra.mxu0 %v744
        %1147 = vmatprep.subr.mxu0 %v750
        %1148 = vmatpush1.msra.mxu0 %v749
        %1149 = vmatprep.subr.mxu0 %v755
        %1150 = vmatpush1.msra.mxu0 %v754
        %1151 = vmatprep.subr.mxu0 %v760
        %1152 = vmatpush1.msra.mxu0 %v759
        %1153 = vmatprep.subr.mxu0 %v765
        %1154 = vmatpush1.msra.mxu0 %v764
        %1155 = vmatprep.mubr.f32.mxu0 %v943
        %1156 = vmatmul.mubr.f32.gmra.mrb[0].mxu0 %v935
        %v1157 = vpop.f32.mrb[0].mxu0
        %v1158 = vadd.f32 0.0, %v1157
        %v1159 = vpop.f32.mrb[0].mxu0
        %v1160 = vadd.f32 0.0, %v1159
        %1161 = vdwg.mxu0
        %1162 = vmatprep.subr.mxu0 %v770
        %1163 = vmatpush1.msra.mxu0 %v769
        %1164 = vmatprep.subr.mxu0 %v775
        %1165 = vmatpush1.msra.mxu0 %v774
        %1166 = vmatprep.subr.mxu0 %v780
        %1167 = vmatpush1.msra.mxu0 %v779
        %1168 = vmatprep.subr.mxu0 %v785
        %1169 = vmatpush1.msra.mxu0 %v784
        %1170 = vmatprep.subr.mxu0 %v790
        %1171 = vmatpush1.msra.mxu0 %v789
        %1172 = vmatprep.subr.mxu0 %v795
        %1173 = vmatpush1.msra.mxu0 %v794
        %1174 = vmatprep.subr.mxu0 %v800
        %1175 = vmatpush1.msra.mxu0 %v799
        %1176 = vmatprep.subr.mxu0 %v805
        %1177 = vmatpush1.msra.mxu0 %v804
        %1178 = vmatprep.subr.mxu0 %v810
        %1179 = vmatpush1.msra.mxu0 %v809
        %1180 = vmatprep.subr.mxu0 %v815
        %1181 = vmatpush1.msra.mxu0 %v814
        %1182 = vmatprep.subr.mxu0 %v820
        %1183 = vmatpush1.msra.mxu0 %v819
        %1184 = vmatprep.subr.mxu0 %v825
        %1185 = vmatpush1.msra.mxu0 %v824
        %1186 = vmatprep.subr.mxu0 %v830
        %1187 = vmatpush1.msra.mxu0 %v829
        %1188 = vmatprep.subr.mxu0 %v835
        %1189 = vmatpush1.msra.mxu0 %v834
        %1190 = vmatprep.subr.mxu0 %v840
        %1191 = vmatpush1.msra.mxu0 %v839
        %1192 = vmatprep.subr.mxu0 %v845
        %1193 = vmatpush1.msra.mxu0 %v844
        %1194 = vmatprep.subr.mxu0 %v850
        %1195 = vmatpush1.msra.mxu0 %v849
        %1196 = vmatprep.subr.mxu0 %v855
        %1197 = vmatpush1.msra.mxu0 %v854
        %1198 = vmatprep.subr.mxu0 %v860
        %1199 = vmatpush1.msra.mxu0 %v859
        %1200 = vmatprep.subr.mxu0 %v865
        %1201 = vmatpush1.msra.mxu0 %v864
        %1202 = vmatprep.subr.mxu0 %v870
        %1203 = vmatpush1.msra.mxu0 %v869
        %1204 = vmatprep.subr.mxu0 %v875
        %1205 = vmatpush1.msra.mxu0 %v874
        %1206 = vmatprep.subr.mxu0 %v880
        %1207 = vmatpush1.msra.mxu0 %v879
        %1208 = vmatprep.subr.mxu0 %v885
        %1209 = vmatpush1.msra.mxu0 %v884
        %1210 = vmatprep.subr.mxu0 %v890
        %1211 = vmatpush1.msra.mxu0 %v889
        %1212 = vmatprep.subr.mxu0 %v895
        %1213 = vmatpush1.msra.mxu0 %v894
        %1214 = vmatprep.subr.mxu0 %v900
        %1215 = vmatpush1.msra.mxu0 %v899
        %1216 = vmatprep.subr.mxu0 %v905
        %1217 = vmatpush1.msra.mxu0 %v904
        %1218 = vmatprep.subr.mxu0 %v910
        %1219 = vmatpush1.msra.mxu0 %v909
        %1220 = vmatprep.subr.mxu0 %v915
        %1221 = vmatpush1.msra.mxu0 %v914
        %1222 = vmatprep.subr.mxu0 %v920
        %1223 = vmatpush1.msra.mxu0 %v919
        %1224 = vmatprep.subr.mxu0 %v925
        %1225 = vmatpush1.msra.mxu0 %v924
        %1226 = vmatprep.mubr.f32.mxu0 %v944
        %1227 = vmatmul.mubr.f32.gmra.mrb[0].mxu0 %v942
        %v1228 = vpop.f32.mrb[0].mxu0
        %v1229 = vadd.f32 %v1158, %v1228
        %v1230 = vpop.f32.mrb[0].mxu0
        %v1231 = vadd.f32 %v1160, %v1230
        %1232 = vdwg.mxu0
        %1233 = vmatprep.subr.mxu0 0.0
        %1234 = vmatpush1.msra.mxu0 %v611
        %1235 = vmatprep.subr.mxu0 0.0
        %1236 = vmatpush1.msra.mxu0 %v616
        %1237 = vmatprep.subr.mxu0 0.0
        %1238 = vmatpush1.msra.mxu0 %v621
        %1239 = vmatprep.subr.mxu0 0.0
        %1240 = vmatpush1.msra.mxu0 %v626
        %1241 = vmatprep.subr.mxu0 0.0
        %1242 = vmatpush1.msra.mxu0 %v631
        %1243 = vmatprep.subr.mxu0 0.0
        %1244 = vmatpush1.msra.mxu0 %v636
        %1245 = vmatprep.subr.mxu0 0.0
        %1246 = vmatpush1.msra.mxu0 %v641
        %1247 = vmatprep.subr.mxu0 0.0
        %1248 = vmatpush1.msra.mxu0 %v646
        %1249 = vmatprep.subr.mxu0 0.0
        %1250 = vmatpush1.msra.mxu0 %v651
        %1251 = vmatprep.subr.mxu0 0.0
        %1252 = vmatpush1.msra.mxu0 %v656
        %1253 = vmatprep.subr.mxu0 0.0
        %1254 = vmatpush1.msra.mxu0 %v661
        %1255 = vmatprep.subr.mxu0 0.0
        %1256 = vmatpush1.msra.mxu0 %v666
        %1257 = vmatprep.subr.mxu0 0.0
        %1258 = vmatpush1.msra.mxu0 %v671
        %1259 = vmatprep.subr.mxu0 0.0
        %1260 = vmatpush1.msra.mxu0 %v676
        %1261 = vmatprep.subr.mxu0 0.0
        %1262 = vmatpush1.msra.mxu0 %v681
        %1263 = vmatprep.subr.mxu0 0.0
        %1264 = vmatpush1.msra.mxu0 %v686
        %1265 = vmatprep.subr.mxu0 0.0
        %1266 = vmatpush1.msra.mxu0 %v691
        %1267 = vmatprep.subr.mxu0 0.0
        %1268 = vmatpush1.msra.mxu0 %v696
        %1269 = vmatprep.subr.mxu0 0.0
        %1270 = vmatpush1.msra.mxu0 %v701
        %1271 = vmatprep.subr.mxu0 0.0
        %1272 = vmatpush1.msra.mxu0 %v706
        %1273 = vmatprep.subr.mxu0 0.0
        %1274 = vmatpush1.msra.mxu0 %v711
        %1275 = vmatprep.subr.mxu0 0.0
        %1276 = vmatpush1.msra.mxu0 %v716
        %1277 = vmatprep.subr.mxu0 0.0
        %1278 = vmatpush1.msra.mxu0 %v721
        %1279 = vmatprep.subr.mxu0 0.0
        %1280 = vmatpush1.msra.mxu0 %v726
        %1281 = vmatprep.subr.mxu0 0.0
        %1282 = vmatpush1.msra.mxu0 %v731
        %1283 = vmatprep.subr.mxu0 0.0
        %1284 = vmatpush1.msra.mxu0 %v736
        %1285 = vmatprep.subr.mxu0 0.0
        %1286 = vmatpush1.msra.mxu0 %v741
        %1287 = vmatprep.subr.mxu0 0.0
        %1288 = vmatpush1.msra.mxu0 %v746
        %1289 = vmatprep.subr.mxu0 0.0
        %1290 = vmatpush1.msra.mxu0 %v751
        %1291 = vmatprep.subr.mxu0 0.0
        %1292 = vmatpush1.msra.mxu0 %v756
        %1293 = vmatprep.subr.mxu0 0.0
        %1294 = vmatpush1.msra.mxu0 %v761
        %1295 = vmatprep.subr.mxu0 0.0
        %1296 = vmatpush1.msra.mxu0 %v766
        %1297 = vmatprep.mubr.f32.mxu0 %v943
        %1298 = vmatmul.mubr.f32.gmra.mrb[0].mxu0 %v935
        %v1299 = vpop.f32.mrb[0].mxu0
        %v1300 = vadd.f32 0.0, %v1299
        %v1301 = vpop.f32.mrb[0].mxu0
        %1302 = vdwg.mxu0
        %1303 = vmatprep.subr.mxu0 0.0
        %1304 = vmatpush1.msra.mxu0 %v771
        %1305 = vmatprep.subr.mxu0 0.0
        %1306 = vmatpush1.msra.mxu0 %v776
        %1307 = vmatprep.subr.mxu0 0.0
        %1308 = vmatpush1.msra.mxu0 %v781
        %1309 = vmatprep.subr.mxu0 0.0
        %1310 = vmatpush1.msra.mxu0 %v786
        %1311 = vmatprep.subr.mxu0 0.0
        %1312 = vmatpush1.msra.mxu0 %v791
        %1313 = vmatprep.subr.mxu0 0.0
        %1314 = vmatpush1.msra.mxu0 %v796
        %1315 = vmatprep.subr.mxu0 0.0
        %1316 = vmatpush1.msra.mxu0 %v801
        %1317 = vmatprep.subr.mxu0 0.0
        %1318 = vmatpush1.msra.mxu0 %v806
        %1319 = vmatprep.subr.mxu0 0.0
        %1320 = vmatpush1.msra.mxu0 %v811
        %1321 = vmatprep.subr.mxu0 0.0
        %1322 = vmatpush1.msra.mxu0 %v816
        %1323 = vmatprep.subr.mxu0 0.0
        %1324 = vmatpush1.msra.mxu0 %v821
        %1325 = vmatprep.subr.mxu0 0.0
        %1326 = vmatpush1.msra.mxu0 %v826
        %1327 = vmatprep.subr.mxu0 0.0
        %1328 = vmatpush1.msra.mxu0 %v831
        %1329 = vmatprep.subr.mxu0 0.0
        %1330 = vmatpush1.msra.mxu0 %v836
        %1331 = vmatprep.subr.mxu0 0.0
        %1332 = vmatpush1.msra.mxu0 %v841
        %1333 = vmatprep.subr.mxu0 0.0
        %1334 = vmatpush1.msra.mxu0 %v846
        %1335 = vmatprep.subr.mxu0 0.0
        %1336 = vmatpush1.msra.mxu0 %v851
        %1337 = vmatprep.subr.mxu0 0.0
        %1338 = vmatpush1.msra.mxu0 %v856
        %1339 = vmatprep.subr.mxu0 0.0
        %1340 = vmatpush1.msra.mxu0 %v861
        %1341 = vmatprep.subr.mxu0 0.0
        %1342 = vmatpush1.msra.mxu0 %v866
        %1343 = vmatprep.subr.mxu0 0.0
        %1344 = vmatpush1.msra.mxu0 %v871
        %1345 = vmatprep.subr.mxu0 0.0
        %1346 = vmatpush1.msra.mxu0 %v876
        %1347 = vmatprep.subr.mxu0 0.0
        %1348 = vmatpush1.msra.mxu0 %v881
        %1349 = vmatprep.subr.mxu0 0.0
        %1350 = vmatpush1.msra.mxu0 %v886
        %1351 = vmatprep.subr.mxu0 0.0
        %1352 = vmatpush1.msra.mxu0 %v891
        %1353 = vmatprep.subr.mxu0 0.0
        %1354 = vmatpush1.msra.mxu0 %v896
        %1355 = vmatprep.subr.mxu0 0.0
        %1356 = vmatpush1.msra.mxu0 %v901
        %1357 = vmatprep.subr.mxu0 0.0
        %1358 = vmatpush1.msra.mxu0 %v906
        %1359 = vmatprep.subr.mxu0 0.0
        %1360 = vmatpush1.msra.mxu0 %v911
        %1361 = vmatprep.subr.mxu0 0.0
        %1362 = vmatpush1.msra.mxu0 %v916
        %1363 = vmatprep.subr.mxu0 0.0
        %1364 = vmatpush1.msra.mxu0 %v921
        %1365 = vmatprep.subr.mxu0 0.0
        %1366 = vmatpush1.msra.mxu0 %v926
        %1367 = vmatprep.mubr.f32.mxu0 %v944
        %1368 = vmatmul.mubr.f32.gmra.mrb[0].mxu0 %v942
        %v1369 = vpop.f32.mrb[0].mxu0
        %v1370 = vadd.f32 %v1300, %v1369
        %v1371 = vpop.f32.mrb[0].mxu0
        %1372 = vdwg.mxu0
        %v1374 = vcombine.high %v285, %v285
        %v1376 = vunpack.c.l.s4 1983009808
        %v1377 = vunpack.c.0.s8 %v1376
        %v1378 = vlaneseq
        %v1379 = vshrl.u32 %v1378, 7
        %v1380 = vsub.s32 %v1377, %v1379
        %v1381 = vrot.slane %v285, %v1380
        %v1383 = vunpack.c.l.s4 1983009808
        %v1384 = vunpack.c.0.s8 %v1383
        %v1385 = vlaneseq
        %v1386 = vshrl.u32 %v1385, 7
        %v1387 = vsub.s32 %v1384, %v1386
        %v1388 = vrot.slane %v1374, %v1387
        %v1389 = vcombine.high %v1381, %v1381
        %v1390 = vcombine.high %v1388, %v1388
        %1395 = vmatprep.subr.mxu0 %v287
        %1396 = vmatpush1.msra.mxu0 %v286
        %1397 = vmatprep.subr.mxu0 %v292
        %1398 = vmatpush1.msra.mxu0 %v291
        %1399 = vmatprep.subr.mxu0 %v297
        %1400 = vmatpush1.msra.mxu0 %v296
        %1401 = vmatprep.subr.mxu0 %v302
        %1402 = vmatpush1.msra.mxu0 %v301
        %1403 = vmatprep.subr.mxu0 %v307
        %1404 = vmatpush1.msra.mxu0 %v306
        %1405 = vmatprep.subr.mxu0 %v312
        %1406 = vmatpush1.msra.mxu0 %v311
        %1407 = vmatprep.subr.mxu0 %v317
        %1408 = vmatpush1.msra.mxu0 %v316
        %1409 = vmatprep.subr.mxu0 %v322
        %1410 = vmatpush1.msra.mxu0 %v321
        %1411 = vmatprep.subr.mxu0 %v327
        %1412 = vmatpush1.msra.mxu0 %v326
        %1413 = vmatprep.subr.mxu0 %v332
        %1414 = vmatpush1.msra.mxu0 %v331
        %1415 = vmatprep.subr.mxu0 %v337
        %1416 = vmatpush1.msra.mxu0 %v336
        %1417 = vmatprep.subr.mxu0 %v342
        %1418 = vmatpush1.msra.mxu0 %v341
        %1419 = vmatprep.subr.mxu0 %v347
        %1420 = vmatpush1.msra.mxu0 %v346
        %1421 = vmatprep.subr.mxu0 %v352
        %1422 = vmatpush1.msra.mxu0 %v351
        %1423 = vmatprep.subr.mxu0 %v357
        %1424 = vmatpush1.msra.mxu0 %v356
        %1425 = vmatprep.subr.mxu0 %v362
        %1426 = vmatpush1.msra.mxu0 %v361
        %1427 = vmatprep.subr.mxu0 %v367
        %1428 = vmatpush1.msra.mxu0 %v366
        %1429 = vmatprep.subr.mxu0 %v372
        %1430 = vmatpush1.msra.mxu0 %v371
        %1431 = vmatprep.subr.mxu0 %v377
        %1432 = vmatpush1.msra.mxu0 %v376
        %1433 = vmatprep.subr.mxu0 %v382
        %1434 = vmatpush1.msra.mxu0 %v381
        %1435 = vmatprep.subr.mxu0 %v387
        %1436 = vmatpush1.msra.mxu0 %v386
        %1437 = vmatprep.subr.mxu0 %v392
        %1438 = vmatpush1.msra.mxu0 %v391
        %1439 = vmatprep.subr.mxu0 %v397
        %1440 = vmatpush1.msra.mxu0 %v396
        %1441 = vmatprep.subr.mxu0 %v402
        %1442 = vmatpush1.msra.mxu0 %v401
        %1443 = vmatprep.subr.mxu0 %v407
        %1444 = vmatpush1.msra.mxu0 %v406
        %1445 = vmatprep.subr.mxu0 %v412
        %1446 = vmatpush1.msra.mxu0 %v411
        %1447 = vmatprep.subr.mxu0 %v417
        %1448 = vmatpush1.msra.mxu0 %v416
        %1449 = vmatprep.subr.mxu0 %v422
        %1450 = vmatpush1.msra.mxu0 %v421
        %1451 = vmatprep.subr.mxu0 %v427
        %1452 = vmatpush1.msra.mxu0 %v426
        %1453 = vmatprep.subr.mxu0 %v432
        %1454 = vmatpush1.msra.mxu0 %v431
        %1455 = vmatprep.subr.mxu0 %v437
        %1456 = vmatpush1.msra.mxu0 %v436
        %1457 = vmatprep.subr.mxu0 %v442
        %1458 = vmatpush1.msra.mxu0 %v441
        %1459 = vmatprep.mubr.f32.mxu0 %v1389
        %1460 = vmatmul.mubr.f32.gmra.mrb[0].mxu0 %v1381
        %v1461 = vpop.f32.mrb[0].mxu0
        %v1462 = vadd.f32 %v1087, %v1461
        %v1463 = vpop.f32.mrb[0].mxu0
        %v1464 = vadd.f32 %v1089, %v1463
        %1465 = vdwg.mxu0
        %1466 = vmatprep.subr.mxu0 %v447
        %1467 = vmatpush1.msra.mxu0 %v446
        %1468 = vmatprep.subr.mxu0 %v452
        %1469 = vmatpush1.msra.mxu0 %v451
        %1470 = vmatprep.subr.mxu0 %v457
        %1471 = vmatpush1.msra.mxu0 %v456
        %1472 = vmatprep.subr.mxu0 %v462
        %1473 = vmatpush1.msra.mxu0 %v461
        %1474 = vmatprep.subr.mxu0 %v467
        %1475 = vmatpush1.msra.mxu0 %v466
        %1476 = vmatprep.subr.mxu0 %v472
        %1477 = vmatpush1.msra.mxu0 %v471
        %1478 = vmatprep.subr.mxu0 %v477
        %1479 = vmatpush1.msra.mxu0 %v476
        %1480 = vmatprep.subr.mxu0 %v482
        %1481 = vmatpush1.msra.mxu0 %v481
        %1482 = vmatprep.subr.mxu0 %v487
        %1483 = vmatpush1.msra.mxu0 %v486
        %1484 = vmatprep.subr.mxu0 %v492
        %1485 = vmatpush1.msra.mxu0 %v491
        %1486 = vmatprep.subr.mxu0 %v497
        %1487 = vmatpush1.msra.mxu0 %v496
        %1488 = vmatprep.subr.mxu0 %v502
        %1489 = vmatpush1.msra.mxu0 %v501
        %1490 = vmatprep.subr.mxu0 %v507
        %1491 = vmatpush1.msra.mxu0 %v506
        %1492 = vmatprep.subr.mxu0 %v512
        %1493 = vmatpush1.msra.mxu0 %v511
        %1494 = vmatprep.subr.mxu0 %v517
        %1495 = vmatpush1.msra.mxu0 %v516
        %1496 = vmatprep.subr.mxu0 %v522
        %1497 = vmatpush1.msra.mxu0 %v521
        %1498 = vmatprep.subr.mxu0 %v527
        %1499 = vmatpush1.msra.mxu0 %v526
        %1500 = vmatprep.subr.mxu0 %v532
        %1501 = vmatpush1.msra.mxu0 %v531
        %1502 = vmatprep.subr.mxu0 %v537
        %1503 = vmatpush1.msra.mxu0 %v536
        %1504 = vmatprep.subr.mxu0 %v542
        %1505 = vmatpush1.msra.mxu0 %v541
        %1506 = vmatprep.subr.mxu0 %v547
        %1507 = vmatpush1.msra.mxu0 %v546
        %1508 = vmatprep.subr.mxu0 %v552
        %1509 = vmatpush1.msra.mxu0 %v551
        %1510 = vmatprep.subr.mxu0 %v557
        %1511 = vmatpush1.msra.mxu0 %v556
        %1512 = vmatprep.subr.mxu0 %v562
        %1513 = vmatpush1.msra.mxu0 %v561
        %1514 = vmatprep.subr.mxu0 %v567
        %1515 = vmatpush1.msra.mxu0 %v566
        %1516 = vmatprep.subr.mxu0 %v572
        %1517 = vmatpush1.msra.mxu0 %v571
        %1518 = vmatprep.subr.mxu0 %v577
        %1519 = vmatpush1.msra.mxu0 %v576
        %1520 = vmatprep.subr.mxu0 %v582
        %1521 = vmatpush1.msra.mxu0 %v581
        %1522 = vmatprep.subr.mxu0 %v587
        %1523 = vmatpush1.msra.mxu0 %v586
        %1524 = vmatprep.subr.mxu0 %v592
        %1525 = vmatpush1.msra.mxu0 %v591
        %1526 = vmatprep.subr.mxu0 %v597
        %1527 = vmatpush1.msra.mxu0 %v596
        %1528 = vmatprep.subr.mxu0 %v602
        %1529 = vmatpush1.msra.mxu0 %v601
        %1530 = vmatprep.mubr.f32.mxu0 %v1390
        %1531 = vmatmul.mubr.f32.gmra.mrb[0].mxu0 %v1388
        %v1532 = vpop.f32.mrb[0].mxu0
        %v1533 = vadd.f32 %v1462, %v1532
        %v1534 = vpop.f32.mrb[0].mxu0
        %v1535 = vadd.f32 %v1464, %v1534
        %1536 = vdwg.mxu0
        %1537 = vmatprep.subr.mxu0 %v289
        %1538 = vmatpush1.msra.mxu0 %v288
        %1539 = vmatprep.subr.mxu0 %v294
        %1540 = vmatpush1.msra.mxu0 %v293
        %1541 = vmatprep.subr.mxu0 %v299
        %1542 = vmatpush1.msra.mxu0 %v298
        %1543 = vmatprep.subr.mxu0 %v304
        %1544 = vmatpush1.msra.mxu0 %v303
        %1545 = vmatprep.subr.mxu0 %v309
        %1546 = vmatpush1.msra.mxu0 %v308
        %1547 = vmatprep.subr.mxu0 %v314
        %1548 = vmatpush1.msra.mxu0 %v313
        %1549 = vmatprep.subr.mxu0 %v319
        %1550 = vmatpush1.msra.mxu0 %v318
        %1551 = vmatprep.subr.mxu0 %v324
        %1552 = vmatpush1.msra.mxu0 %v323
        %1553 = vmatprep.subr.mxu0 %v329
        %1554 = vmatpush1.msra.mxu0 %v328
        %1555 = vmatprep.subr.mxu0 %v334
        %1556 = vmatpush1.msra.mxu0 %v333
        %1557 = vmatprep.subr.mxu0 %v339
        %1558 = vmatpush1.msra.mxu0 %v338
        %1559 = vmatprep.subr.mxu0 %v344
        %1560 = vmatpush1.msra.mxu0 %v343
        %1561 = vmatprep.subr.mxu0 %v349
        %1562 = vmatpush1.msra.mxu0 %v348
        %1563 = vmatprep.subr.mxu0 %v354
        %1564 = vmatpush1.msra.mxu0 %v353
        %1565 = vmatprep.subr.mxu0 %v359
        %1566 = vmatpush1.msra.mxu0 %v358
        %1567 = vmatprep.subr.mxu0 %v364
        %1568 = vmatpush1.msra.mxu0 %v363
        %1569 = vmatprep.subr.mxu0 %v369
        %1570 = vmatpush1.msra.mxu0 %v368
        %1571 = vmatprep.subr.mxu0 %v374
        %1572 = vmatpush1.msra.mxu0 %v373
        %1573 = vmatprep.subr.mxu0 %v379
        %1574 = vmatpush1.msra.mxu0 %v378
        %1575 = vmatprep.subr.mxu0 %v384
        %1576 = vmatpush1.msra.mxu0 %v383
        %1577 = vmatprep.subr.mxu0 %v389
        %1578 = vmatpush1.msra.mxu0 %v388
        %1579 = vmatprep.subr.mxu0 %v394
        %1580 = vmatpush1.msra.mxu0 %v393
        %1581 = vmatprep.subr.mxu0 %v399
        %1582 = vmatpush1.msra.mxu0 %v398
        %1583 = vmatprep.subr.mxu0 %v404
        %1584 = vmatpush1.msra.mxu0 %v403
        %1585 = vmatprep.subr.mxu0 %v409
        %1586 = vmatpush1.msra.mxu0 %v408
        %1587 = vmatprep.subr.mxu0 %v414
        %1588 = vmatpush1.msra.mxu0 %v413
        %1589 = vmatprep.subr.mxu0 %v419
        %1590 = vmatpush1.msra.mxu0 %v418
        %1591 = vmatprep.subr.mxu0 %v424
        %1592 = vmatpush1.msra.mxu0 %v423
        %1593 = vmatprep.subr.mxu0 %v429
        %1594 = vmatpush1.msra.mxu0 %v428
        %1595 = vmatprep.subr.mxu0 %v434
        %1596 = vmatpush1.msra.mxu0 %v433
        %1597 = vmatprep.subr.mxu0 %v439
        %1598 = vmatpush1.msra.mxu0 %v438
        %1599 = vmatprep.subr.mxu0 %v444
        %1600 = vmatpush1.msra.mxu0 %v443
        %1601 = vmatprep.mubr.f32.mxu0 %v1389
        %1602 = vmatmul.mubr.f32.gmra.mrb[0].mxu0 %v1381
        %v1603 = vpop.f32.mrb[0].mxu0
        %v1604 = vadd.f32 %v1229, %v1603
        %v1605 = vpop.f32.mrb[0].mxu0
        %v1606 = vadd.f32 %v1231, %v1605
        %1607 = vdwg.mxu0
        %1608 = vmatprep.subr.mxu0 %v449
        %1609 = vmatpush1.msra.mxu0 %v448
        %1610 = vmatprep.subr.mxu0 %v454
        %1611 = vmatpush1.msra.mxu0 %v453
        %1612 = vmatprep.subr.mxu0 %v459
        %1613 = vmatpush1.msra.mxu0 %v458
        %1614 = vmatprep.subr.mxu0 %v464
        %1615 = vmatpush1.msra.mxu0 %v463
        %1616 = vmatprep.subr.mxu0 %v469
        %1617 = vmatpush1.msra.mxu0 %v468
        %1618 = vmatprep.subr.mxu0 %v474
        %1619 = vmatpush1.msra.mxu0 %v473
        %1620 = vmatprep.subr.mxu0 %v479
        %1621 = vmatpush1.msra.mxu0 %v478
        %1622 = vmatprep.subr.mxu0 %v484
        %1623 = vmatpush1.msra.mxu0 %v483
        %1624 = vmatprep.subr.mxu0 %v489
        %1625 = vmatpush1.msra.mxu0 %v488
        %1626 = vmatprep.subr.mxu0 %v494
        %1627 = vmatpush1.msra.mxu0 %v493
        %1628 = vmatprep.subr.mxu0 %v499
        %1629 = vmatpush1.msra.mxu0 %v498
        %1630 = vmatprep.subr.mxu0 %v504
        %1631 = vmatpush1.msra.mxu0 %v503
        %1632 = vmatprep.subr.mxu0 %v509
        %1633 = vmatpush1.msra.mxu0 %v508
        %1634 = vmatprep.subr.mxu0 %v514
        %1635 = vmatpush1.msra.mxu0 %v513
        %1636 = vmatprep.subr.mxu0 %v519
        %1637 = vmatpush1.msra.mxu0 %v518
        %1638 = vmatprep.subr.mxu0 %v524
        %1639 = vmatpush1.msra.mxu0 %v523
        %1640 = vmatprep.subr.mxu0 %v529
        %1641 = vmatpush1.msra.mxu0 %v528
        %1642 = vmatprep.subr.mxu0 %v534
        %1643 = vmatpush1.msra.mxu0 %v533
        %1644 = vmatprep.subr.mxu0 %v539
        %1645 = vmatpush1.msra.mxu0 %v538
        %1646 = vmatprep.subr.mxu0 %v544
        %1647 = vmatpush1.msra.mxu0 %v543
        %1648 = vmatprep.subr.mxu0 %v549
        %1649 = vmatpush1.msra.mxu0 %v548
        %1650 = vmatprep.subr.mxu0 %v554
        %1651 = vmatpush1.msra.mxu0 %v553
        %1652 = vmatprep.subr.mxu0 %v559
        %1653 = vmatpush1.msra.mxu0 %v558
        %1654 = vmatprep.subr.mxu0 %v564
        %1655 = vmatpush1.msra.mxu0 %v563
        %1656 = vmatprep.subr.mxu0 %v569
        %1657 = vmatpush1.msra.mxu0 %v568
        %1658 = vmatprep.subr.mxu0 %v574
        %1659 = vmatpush1.msra.mxu0 %v573
        %1660 = vmatprep.subr.mxu0 %v579
        %1661 = vmatpush1.msra.mxu0 %v578
        %1662 = vmatprep.subr.mxu0 %v584
        %1663 = vmatpush1.msra.mxu0 %v583
        %1664 = vmatprep.subr.mxu0 %v589
        %1665 = vmatpush1.msra.mxu0 %v588
        %1666 = vmatprep.subr.mxu0 %v594
        %1667 = vmatpush1.msra.mxu0 %v593
        %1668 = vmatprep.subr.mxu0 %v599
        %1669 = vmatpush1.msra.mxu0 %v598
        %1670 = vmatprep.subr.mxu0 %v604
        %1671 = vmatpush1.msra.mxu0 %v603
        %1672 = vmatprep.mubr.f32.mxu0 %v1390
        %1673 = vmatmul.mubr.f32.gmra.mrb[0].mxu0 %v1388
        %v1674 = vpop.f32.mrb[0].mxu0
        %v1675 = vadd.f32 %v1604, %v1674
        %v1676 = vpop.f32.mrb[0].mxu0
        %v1677 = vadd.f32 %v1606, %v1676
        %1678 = vdwg.mxu0
        %1679 = vmatprep.subr.mxu0 0.0
        %1680 = vmatpush1.msra.mxu0 %v290
        %1681 = vmatprep.subr.mxu0 0.0
        %1682 = vmatpush1.msra.mxu0 %v295
        %1683 = vmatprep.subr.mxu0 0.0
        %1684 = vmatpush1.msra.mxu0 %v300
        %1685 = vmatprep.subr.mxu0 0.0
        %1686 = vmatpush1.msra.mxu0 %v305
        %1687 = vmatprep.subr.mxu0 0.0
        %1688 = vmatpush1.msra.mxu0 %v310
        %1689 = vmatprep.subr.mxu0 0.0
        %1690 = vmatpush1.msra.mxu0 %v315
        %1691 = vmatprep.subr.mxu0 0.0
        %1692 = vmatpush1.msra.mxu0 %v320
        %1693 = vmatprep.subr.mxu0 0.0
        %1694 = vmatpush1.msra.mxu0 %v325
        %1695 = vmatprep.subr.mxu0 0.0
        %1696 = vmatpush1.msra.mxu0 %v330
        %1697 = vmatprep.subr.mxu0 0.0
        %1698 = vmatpush1.msra.mxu0 %v335
        %1699 = vmatprep.subr.mxu0 0.0
        %1700 = vmatpush1.msra.mxu0 %v340
        %1701 = vmatprep.subr.mxu0 0.0
        %1702 = vmatpush1.msra.mxu0 %v345
        %1703 = vmatprep.subr.mxu0 0.0
        %1704 = vmatpush1.msra.mxu0 %v350
        %1705 = vmatprep.subr.mxu0 0.0
        %1706 = vmatpush1.msra.mxu0 %v355
        %1707 = vmatprep.subr.mxu0 0.0
        %1708 = vmatpush1.msra.mxu0 %v360
        %1709 = vmatprep.subr.mxu0 0.0
        %1710 = vmatpush1.msra.mxu0 %v365
        %1711 = vmatprep.subr.mxu0 0.0
        %1712 = vmatpush1.msra.mxu0 %v370
        %1713 = vmatprep.subr.mxu0 0.0
        %1714 = vmatpush1.msra.mxu0 %v375
        %1715 = vmatprep.subr.mxu0 0.0
        %1716 = vmatpush1.msra.mxu0 %v380
        %1717 = vmatprep.subr.mxu0 0.0
        %1718 = vmatpush1.msra.mxu0 %v385
        %1719 = vmatprep.subr.mxu0 0.0
        %1720 = vmatpush1.msra.mxu0 %v390
        %1721 = vmatprep.subr.mxu0 0.0
        %1722 = vmatpush1.msra.mxu0 %v395
        %1723 = vmatprep.subr.mxu0 0.0
        %1724 = vmatpush1.msra.mxu0 %v400
        %1725 = vmatprep.subr.mxu0 0.0
        %1726 = vmatpush1.msra.mxu0 %v405
        %1727 = vmatprep.subr.mxu0 0.0
        %1728 = vmatpush1.msra.mxu0 %v410
        %1729 = vmatprep.subr.mxu0 0.0
        %1730 = vmatpush1.msra.mxu0 %v415
        %1731 = vmatprep.subr.mxu0 0.0
        %1732 = vmatpush1.msra.mxu0 %v420
        %1733 = vmatprep.subr.mxu0 0.0
        %1734 = vmatpush1.msra.mxu0 %v425
        %1735 = vmatprep.subr.mxu0 0.0
        %1736 = vmatpush1.msra.mxu0 %v430
        %1737 = vmatprep.subr.mxu0 0.0
        %1738 = vmatpush1.msra.mxu0 %v435
        %1739 = vmatprep.subr.mxu0 0.0
        %1740 = vmatpush1.msra.mxu0 %v440
        %1741 = vmatprep.subr.mxu0 0.0
        %1742 = vmatpush1.msra.mxu0 %v445
        %1743 = vmatprep.mubr.f32.mxu0 %v1389
        %1744 = vmatmul.mubr.f32.gmra.mrb[0].mxu0 %v1381
        %v1745 = vpop.f32.mrb[0].mxu0
        %v1746 = vadd.f32 %v1370, %v1745
        %v1747 = vpop.f32.mrb[0].mxu0
        %1748 = vdwg.mxu0
        %1749 = vmatprep.subr.mxu0 0.0
        %1750 = vmatpush1.msra.mxu0 %v450
        %1751 = vmatprep.subr.mxu0 0.0
        %1752 = vmatpush1.msra.mxu0 %v455
        %1753 = vmatprep.subr.mxu0 0.0
        %1754 = vmatpush1.msra.mxu0 %v460
        %1755 = vmatprep.subr.mxu0 0.0
        %1756 = vmatpush1.msra.mxu0 %v465
        %1757 = vmatprep.subr.mxu0 0.0
        %1758 = vmatpush1.msra.mxu0 %v470
        %1759 = vmatprep.subr.mxu0 0.0
        %1760 = vmatpush1.msra.mxu0 %v475
        %1761 = vmatprep.subr.mxu0 0.0
        %1762 = vmatpush1.msra.mxu0 %v480
        %1763 = vmatprep.subr.mxu0 0.0
        %1764 = vmatpush1.msra.mxu0 %v485
        %1765 = vmatprep.subr.mxu0 0.0
        %1766 = vmatpush1.msra.mxu0 %v490
        %1767 = vmatprep.subr.mxu0 0.0
        %1768 = vmatpush1.msra.mxu0 %v495
        %1769 = vmatprep.subr.mxu0 0.0
        %1770 = vmatpush1.msra.mxu0 %v500
        %1771 = vmatprep.subr.mxu0 0.0
        %1772 = vmatpush1.msra.mxu0 %v505
        %1773 = vmatprep.subr.mxu0 0.0
        %1774 = vmatpush1.msra.mxu0 %v510
        %1775 = vmatprep.subr.mxu0 0.0
        %1776 = vmatpush1.msra.mxu0 %v515
        %1777 = vmatprep.subr.mxu0 0.0
        %1778 = vmatpush1.msra.mxu0 %v520
        %1779 = vmatprep.subr.mxu0 0.0
        %1780 = vmatpush1.msra.mxu0 %v525
        %1781 = vmatprep.subr.mxu0 0.0
        %1782 = vmatpush1.msra.mxu0 %v530
        %1783 = vmatprep.subr.mxu0 0.0
        %1784 = vmatpush1.msra.mxu0 %v535
        %1785 = vmatprep.subr.mxu0 0.0
        %1786 = vmatpush1.msra.mxu0 %v540
        %1787 = vmatprep.subr.mxu0 0.0
        %1788 = vmatpush1.msra.mxu0 %v545
        %1789 = vmatprep.subr.mxu0 0.0
        %1790 = vmatpush1.msra.mxu0 %v550
        %1791 = vmatprep.subr.mxu0 0.0
        %1792 = vmatpush1.msra.mxu0 %v555
        %1793 = vmatprep.subr.mxu0 0.0
        %1794 = vmatpush1.msra.mxu0 %v560
        %1795 = vmatprep.subr.mxu0 0.0
        %1796 = vmatpush1.msra.mxu0 %v565
        %1797 = vmatprep.subr.mxu0 0.0
        %1798 = vmatpush1.msra.mxu0 %v570
        %1799 = vmatprep.subr.mxu0 0.0
        %1800 = vmatpush1.msra.mxu0 %v575
        %1801 = vmatprep.subr.mxu0 0.0
        %1802 = vmatpush1.msra.mxu0 %v580
        %1803 = vmatprep.subr.mxu0 0.0
        %1804 = vmatpush1.msra.mxu0 %v585
        %1805 = vmatprep.subr.mxu0 0.0
        %1806 = vmatpush1.msra.mxu0 %v590
        %1807 = vmatprep.subr.mxu0 0.0
        %1808 = vmatpush1.msra.mxu0 %v595
        %1809 = vmatprep.subr.mxu0 0.0
        %1810 = vmatpush1.msra.mxu0 %v600
        %1811 = vmatprep.subr.mxu0 0.0
        %1812 = vmatpush1.msra.mxu0 %v605
        %1813 = vmatprep.mubr.f32.mxu0 %v1390
        %1814 = vmatmul.mubr.f32.gmra.mrb[0].mxu0 %v1388
        %v1815 = vpop.f32.mrb[0].mxu0
        %v1816 = vadd.f32 %v1746, %v1815
        %v1817 = vpop.f32.mrb[0].mxu0
        %1818 = vdwg.mxu0
        %v1824 = vcombine.low %v1533, %v1535
        %v1825 = vcombine.low %v1675, %v1677
        %v1827 = vunpack.c.l.s4 1983009808
        %v1828 = vunpack.c.0.s8 %v1827
        %v1829 = vlaneseq
        %v1830 = vshrl.u32 %v1829, 7
        %v1831 = vsub.s32 %v1828, %v1830
        %v1832 = vrot.slane %v1824, %v1831
        %v1834 = vunpack.c.l.s4 1983009808
        %v1835 = vunpack.c.0.s8 %v1834
        %v1836 = vlaneseq
        %v1837 = vshrl.u32 %v1836, 7
        %v1838 = vsub.s32 %v1835, %v1837
        %v1839 = vrot.slane %v1825, %v1838
        %v1840 = vcombine.low %v1832, %v1839
        %v1842 = vunpack.c.l.s4 1983009808
        %v1843 = vunpack.c.0.s8 %v1842
        %v1844 = vlaneseq
        %v1845 = vshrl.u32 %v1844, 7
        %v1846 = vsub.s32 %v1843, %v1845
        %v1847 = vrot.slane %v1816, %v1846
        %1850 = vst [vmem:[%s265] sm:$0xff] %v1840
        %vm1851 = vcmask 517120
        %1852 = vst.msk [vmem:[%s265 + $0x8] sm:$0x3] %vm1851, %v1847
        %v1853 = vlaneseq
        %v1854 = vand.u32 %v1853, 127
        %v1855 = vadd.s32 %v1854, 128
        %v1856 = vadd.s32 %v1854, 256
        %v1857 = vadd.s32 %v1854, 384
        %v1858 = vadd.s32 %v1854, 512
        %s1859 = smul.u32 %s24, 576
        %s1860 = ssub.s32 1152, %s1859
        %v1861 = vstv %s1860
        %vm1862 = vcmp.lt.s32.totalorder %v1854, %v1861
        %vm1863 = vcmp.lt.s32.totalorder %v1855, %v1861
        %vm1864 = vcmp.lt.s32.totalorder %v1856, %v1861
        %vm1865 = vcmp.lt.s32.totalorder %v1857, %v1861
        %vm1866 = vcmp.lt.s32.totalorder %v1858, %v1861
        %v1867 = vsel %vm1862, 1, 0
        %v1868 = vsel %vm1863, 1, 0
        %v1869 = vsel %vm1864, 1, 0
        %v1870 = vsel %vm1865, 1, 0
        %v1871 = vsel %vm1866, 1, 0
        %vm1872 = vcmp.eq.s32.totalorder %v1867, 1
        %vm1873 = vcmp.eq.s32.totalorder %v1868, 1
        %vm1874 = vcmp.eq.s32.totalorder %v1869, 1
        %vm1875 = vcmp.eq.s32.totalorder %v1870, 1
        %vm1876 = vcmp.eq.s32.totalorder %v1871, 1
        %v1877 = vsel %vm1872, %v1533, 0.0
        %v1878 = vsel %vm1873, %v1535, 0.0
        %v1879 = vsel %vm1874, %v1675, 0.0
        %v1880 = vsel %vm1875, %v1677, 0.0
        %v1881 = vsel %vm1876, %v1816, 0.0
        %vm1882 = vcmask 1041408
        %v1883 = vsel %vm1882, %v1877, 0.0
        %v1884 = vrot.slane %v1883, 4
        %v1885 = vadd.f32 %v1883, %v1884
        %v1886 = vrot.slane %v1885, 2
        %v1887 = vadd.f32 %v1885, %v1886
        %v1888 = vrot.slane %v1887, 1
        %v1889 = vadd.f32 %v1887, %v1888
        %v1890 = vsel %vm1882, %v1878, 0.0
        %v1891 = vrot.slane %v1890, 4
        %v1892 = vadd.f32 %v1890, %v1891
        %v1893 = vrot.slane %v1892, 2
        %v1894 = vadd.f32 %v1892, %v1893
        %v1895 = vrot.slane %v1894, 1
        %v1896 = vadd.f32 %v1894, %v1895
        %v1897 = vsel %vm1882, %v1879, 0.0
        %v1898 = vrot.slane %v1897, 4
        %v1899 = vadd.f32 %v1897, %v1898
        %v1900 = vrot.slane %v1899, 2
        %v1901 = vadd.f32 %v1899, %v1900
        %v1902 = vrot.slane %v1901, 1
        %v1903 = vadd.f32 %v1901, %v1902
        %v1904 = vsel %vm1882, %v1880, 0.0
        %v1905 = vrot.slane %v1904, 4
        %v1906 = vadd.f32 %v1904, %v1905
        %v1907 = vrot.slane %v1906, 2
        %v1908 = vadd.f32 %v1906, %v1907
        %v1909 = vrot.slane %v1908, 1
        %v1910 = vadd.f32 %v1908, %v1909
        %v1911 = vsel %vm1851, %v1881, 0.0
        %v1912 = vrot.slane %v1911, 4
        %v1913 = vadd.f32 %v1911, %v1912
        %v1914 = vrot.slane %v1913, 2
        %v1915 = vadd.f32 %v1913, %v1914
        %v1916 = vrot.slane %v1915, 1
        %v1917 = vadd.f32 %v1915, %v1916
        %v1918 = vmul.f32 %v1877, %v1877
        %v1919 = vmul.f32 %v1878, %v1878
        %v1920 = vmul.f32 %v1879, %v1879
        %v1921 = vmul.f32 %v1880, %v1880
        %v1922 = vmul.f32 %v1881, %v1881
        %v1923 = vsel %vm1882, %v1918, 0.0
        %v1924 = vrot.slane %v1923, 4
        %v1925 = vadd.f32 %v1923, %v1924
        %v1926 = vrot.slane %v1925, 2
        %v1927 = vadd.f32 %v1925, %v1926
        %v1928 = vrot.slane %v1927, 1
        %v1929 = vadd.f32 %v1927, %v1928
        %v1930 = vsel %vm1882, %v1919, 0.0
        %v1931 = vrot.slane %v1930, 4
        %v1932 = vadd.f32 %v1930, %v1931
        %v1933 = vrot.slane %v1932, 2
        %v1934 = vadd.f32 %v1932, %v1933
        %v1935 = vrot.slane %v1934, 1
        %v1936 = vadd.f32 %v1934, %v1935
        %v1937 = vsel %vm1882, %v1920, 0.0
        %v1938 = vrot.slane %v1937, 4
        %v1939 = vadd.f32 %v1937, %v1938
        %v1940 = vrot.slane %v1939, 2
        %v1941 = vadd.f32 %v1939, %v1940
        %v1942 = vrot.slane %v1941, 1
        %v1943 = vadd.f32 %v1941, %v1942
        %v1944 = vsel %vm1882, %v1921, 0.0
        %v1945 = vrot.slane %v1944, 4
        %v1946 = vadd.f32 %v1944, %v1945
        %v1947 = vrot.slane %v1946, 2
        %v1948 = vadd.f32 %v1946, %v1947
        %v1949 = vrot.slane %v1948, 1
        %v1950 = vadd.f32 %v1948, %v1949
        %v1951 = vsel %vm1851, %v1922, 0.0
        %v1952 = vrot.slane %v1951, 4
        %v1953 = vadd.f32 %v1951, %v1952
        %v1954 = vrot.slane %v1953, 2
        %v1955 = vadd.f32 %v1953, %v1954
        %v1956 = vrot.slane %v1955, 1
        %v1957 = vadd.f32 %v1955, %v1956
        %vm1958 = vcmask 1040384
        %v1959 = vsel %vm1958, %v1889, %v1929
        %v1960 = vsel %vm1958, %v1896, %v1936
        %v1961 = vsel %vm1958, %v1903, %v1943
        %v1962 = vsel %vm1958, %v1910, %v1950
        %v1963 = vsel %vm1958, %v1917, %v1957
        %v1964 = vld [vmem:[%s4] sm:$0xff]
        %v1965 = vld [vmem:[%s4 + $0x8] sm:$0xff]
        %v1966 = vld [vmem:[%s4 + $0x10] sm:$0xff]
        %v1967 = vld [vmem:[%s4 + $0x18] sm:$0xff]
        %v1968 = vld [vmem:[%s4 + $0x20] sm:$0xff]
        %v1969 = vld [vmem:[%s4 + $0x28] sm:$0xff]
        %v1970 = vld [vmem:[%s4 + $0x30] sm:$0xff]
        %v1971 = vld [vmem:[%s4 + $0x38] sm:$0xff]
        %v1972 = vld [vmem:[%s4 + $0x40] sm:$0xff]
        %v1973 = vld [vmem:[%s4 + $0x48] sm:$0xff]
        %v1974 = vld [vmem:[%s4 + $0x50] sm:$0xff]
        %v1975 = vld [vmem:[%s4 + $0x58] sm:$0xff]
        %v1976 = vld [vmem:[%s4 + $0x60] sm:$0xff]
        %v1977 = vld [vmem:[%s4 + $0x68] sm:$0xff]
        %v1978 = vld [vmem:[%s4 + $0x70] sm:$0xff]
        %v1979 = vld [vmem:[%s4 + $0x78] sm:$0xff]
        %v1980 = vld [vmem:[%s4 + $0x80] sm:$0xff]
        %v1981 = vld [vmem:[%s4 + $0x88] sm:$0xff]
        %v1982 = vld [vmem:[%s4 + $0x90] sm:$0xff]
        %v1983 = vld [vmem:[%s4 + $0x98] sm:$0xff]
        %v1984 = vld [vmem:[%s4 + $0xa0] sm:$0xff]
        %v1985 = vld [vmem:[%s4 + $0xa8] sm:$0xff]
        %v1986 = vld [vmem:[%s4 + $0xb0] sm:$0xff]
        %v1987 = vld [vmem:[%s4 + $0xb8] sm:$0xff]
        %v1988 = vld [vmem:[%s4 + $0xc0] sm:$0xff]
        %v1989 = vld [vmem:[%s4 + $0xc8] sm:$0xff]
        %v1990 = vld [vmem:[%s4 + $0xd0] sm:$0xff]
        %v1991 = vld [vmem:[%s4 + $0xd8] sm:$0xff]
        %v1992 = vld [vmem:[%s4 + $0xe0] sm:$0xff]
        %v1993 = vld [vmem:[%s4 + $0xe8] sm:$0xff]
        %v1994 = vld [vmem:[%s4 + $0xf0] sm:$0xff]
        %v1995 = vld [vmem:[%s4 + $0xf8] sm:$0xff]
        %v1996 = vld [vmem:[%s4 + $0x100] sm:$0xff]
        %v1997 = vld [vmem:[%s4 + $0x108] sm:$0xff]
        %v1998 = vld [vmem:[%s4 + $0x110] sm:$0xff]
        %v1999 = vld [vmem:[%s4 + $0x118] sm:$0xff]
        %v2000 = vld [vmem:[%s4 + $0x120] sm:$0xff]
        %v2001 = vld [vmem:[%s4 + $0x128] sm:$0xff]
        %v2002 = vld [vmem:[%s4 + $0x130] sm:$0xff]
        %v2003 = vld [vmem:[%s4 + $0x138] sm:$0xff]
        %v2004 = vld [vmem:[%s4 + $0x140] sm:$0xff]
        %v2005 = vld [vmem:[%s4 + $0x148] sm:$0xff]
        %v2006 = vld [vmem:[%s4 + $0x150] sm:$0xff]
        %v2007 = vld [vmem:[%s4 + $0x158] sm:$0xff]
        %v2008 = vld [vmem:[%s4 + $0x160] sm:$0xff]
        %v2009 = vld [vmem:[%s4 + $0x168] sm:$0xff]
        %v2010 = vld [vmem:[%s4 + $0x170] sm:$0xff]
        %v2011 = vld [vmem:[%s4 + $0x178] sm:$0xff]
        %v2012 = vld [vmem:[%s4 + $0x180] sm:$0xff]
        %v2013 = vld [vmem:[%s4 + $0x188] sm:$0xff]
        %v2014 = vld [vmem:[%s4 + $0x190] sm:$0xff]
        %v2015 = vld [vmem:[%s4 + $0x198] sm:$0xff]
        %v2016 = vld [vmem:[%s4 + $0x1a0] sm:$0xff]
        %v2017 = vld [vmem:[%s4 + $0x1a8] sm:$0xff]
        %v2018 = vld [vmem:[%s4 + $0x1b0] sm:$0xff]
        %v2019 = vld [vmem:[%s4 + $0x1b8] sm:$0xff]
        %v2020 = vld [vmem:[%s4 + $0x1c0] sm:$0xff]
        %v2021 = vld [vmem:[%s4 + $0x1c8] sm:$0xff]
        %v2022 = vld [vmem:[%s4 + $0x1d0] sm:$0xff]
        %v2023 = vld [vmem:[%s4 + $0x1d8] sm:$0xff]
        %v2024 = vld [vmem:[%s4 + $0x1e0] sm:$0xff]
        %v2025 = vld [vmem:[%s4 + $0x1e8] sm:$0xff]
        %v2026 = vld [vmem:[%s4 + $0x1f0] sm:$0xff]
        %v2027 = vld [vmem:[%s4 + $0x1f8] sm:$0xff]
        %v2028 = vld [vmem:[%s4 + $0x200] sm:$0xff]
        %v2029 = vld [vmem:[%s4 + $0x208] sm:$0xff]
        %v2030 = vld [vmem:[%s4 + $0x210] sm:$0xff]
        %v2031 = vld [vmem:[%s4 + $0x218] sm:$0xff]
        %v2032 = vld [vmem:[%s4 + $0x220] sm:$0xff]
        %v2033 = vld [vmem:[%s4 + $0x228] sm:$0xff]
        %v2034 = vld [vmem:[%s4 + $0x230] sm:$0xff]
        %v2035 = vld [vmem:[%s4 + $0x238] sm:$0xff]
        %vm2036 = vcmask 523264
        %v2038 = vsel %vm2036, %v1963, 0
        %2040 = vmatprep.subr.mxu0 0.0
        %2041 = vmatpush1.msra.mxu0 %v1964
        %2042 = vmatprep.subr.mxu0 0.0
        %2043 = vmatpush1.msra.mxu0 %v1965
        %2044 = vmatprep.subr.mxu0 0.0
        %2045 = vmatpush1.msra.mxu0 %v1966
        %2046 = vmatprep.subr.mxu0 0.0
        %2047 = vmatpush1.msra.mxu0 %v1967
        %2048 = vmatprep.subr.mxu0 0.0
        %2049 = vmatpush1.msra.mxu0 %v1968
        %2050 = vmatprep.subr.mxu0 0.0
        %2051 = vmatpush1.msra.mxu0 %v1969
        %2052 = vmatprep.subr.mxu0 0.0
        %2053 = vmatpush1.msra.mxu0 %v1970
        %2054 = vmatprep.subr.mxu0 0.0
        %2055 = vmatpush1.msra.mxu0 %v1971
        %2056 = vmatprep.subr.mxu0 0.0
        %2057 = vmatpush1.msra.mxu0 %v1972
        %2058 = vmatprep.subr.mxu0 0.0
        %2059 = vmatpush1.msra.mxu0 %v1973
        %2060 = vmatprep.subr.mxu0 0.0
        %2061 = vmatpush1.msra.mxu0 %v1974
        %2062 = vmatprep.subr.mxu0 0.0
        %2063 = vmatpush1.msra.mxu0 %v1975
        %2064 = vmatprep.subr.mxu0 0.0
        %2065 = vmatpush1.msra.mxu0 %v1976
        %2066 = vmatprep.subr.mxu0 0.0
        %2067 = vmatpush1.msra.mxu0 %v1977
        %2068 = vmatprep.subr.mxu0 0.0
        %2069 = vmatpush1.msra.mxu0 %v1978
        %2070 = vmatprep.subr.mxu0 0.0
        %2071 = vmatpush1.msra.mxu0 %v1979
        %2072 = vmatprep.subr.mxu0 0.0
        %2073 = vmatpush1.msra.mxu0 %v1980
        %2074 = vmatprep.subr.mxu0 0.0
        %2075 = vmatpush1.msra.mxu0 %v1981
        %2076 = vmatprep.subr.mxu0 0.0
        %2077 = vmatpush1.msra.mxu0 %v1982
        %2078 = vmatprep.subr.mxu0 0.0
        %2079 = vmatpush1.msra.mxu0 %v1983
        %2080 = vmatprep.subr.mxu0 0.0
        %2081 = vmatpush1.msra.mxu0 %v1984
        %2082 = vmatprep.subr.mxu0 0.0
        %2083 = vmatpush1.msra.mxu0 %v1985
        %2084 = vmatprep.subr.mxu0 0.0
        %2085 = vmatpush1.msra.mxu0 %v1986
        %2086 = vmatprep.subr.mxu0 0.0
        %2087 = vmatpush1.msra.mxu0 %v1987
        %2088 = vmatprep.subr.mxu0 0.0
        %2089 = vmatpush1.msra.mxu0 %v1988
        %2090 = vmatprep.subr.mxu0 0.0
        %2091 = vmatpush1.msra.mxu0 %v1989
        %2092 = vmatprep.subr.mxu0 0.0
        %2093 = vmatpush1.msra.mxu0 %v1990
        %2094 = vmatprep.subr.mxu0 0.0
        %2095 = vmatpush1.msra.mxu0 %v1991
        %2096 = vmatprep.subr.mxu0 0.0
        %2097 = vmatpush1.msra.mxu0 %v1992
        %2098 = vmatprep.subr.mxu0 0.0
        %2099 = vmatpush1.msra.mxu0 %v1993
        %2100 = vmatprep.subr.mxu0 0.0
        %2101 = vmatpush1.msra.mxu0 %v1994
        %2102 = vmatprep.subr.mxu0 0.0
        %2103 = vmatpush1.msra.mxu0 %v1995
        %2104 = vmatprep.mubr.f32.mxu0 %v1960
        %2105 = vmatmul.mubr.f32.gmra.mrb[0].mxu0 %v1959
        %v2106 = vpop.f32.mrb[0].mxu0
        %v2107 = vadd.f32 0.0, %v2106
        %v2108 = vpop.f32.mrb[0].mxu0
        %2109 = vdwg.mxu0
        %2110 = vmatprep.subr.mxu0 0.0
        %2111 = vmatpush1.msra.mxu0 %v1996
        %2112 = vmatprep.subr.mxu0 0.0
        %2113 = vmatpush1.msra.mxu0 %v1997
        %2114 = vmatprep.subr.mxu0 0.0
        %2115 = vmatpush1.msra.mxu0 %v1998
        %2116 = vmatprep.subr.mxu0 0.0
        %2117 = vmatpush1.msra.mxu0 %v1999
        %2118 = vmatprep.subr.mxu0 0.0
        %2119 = vmatpush1.msra.mxu0 %v2000
        %2120 = vmatprep.subr.mxu0 0.0
        %2121 = vmatpush1.msra.mxu0 %v2001
        %2122 = vmatprep.subr.mxu0 0.0
        %2123 = vmatpush1.msra.mxu0 %v2002
        %2124 = vmatprep.subr.mxu0 0.0
        %2125 = vmatpush1.msra.mxu0 %v2003
        %2126 = vmatprep.subr.mxu0 0.0
        %2127 = vmatpush1.msra.mxu0 %v2004
        %2128 = vmatprep.subr.mxu0 0.0
        %2129 = vmatpush1.msra.mxu0 %v2005
        %2130 = vmatprep.subr.mxu0 0.0
        %2131 = vmatpush1.msra.mxu0 %v2006
        %2132 = vmatprep.subr.mxu0 0.0
        %2133 = vmatpush1.msra.mxu0 %v2007
        %2134 = vmatprep.subr.mxu0 0.0
        %2135 = vmatpush1.msra.mxu0 %v2008
        %2136 = vmatprep.subr.mxu0 0.0
        %2137 = vmatpush1.msra.mxu0 %v2009
        %2138 = vmatprep.subr.mxu0 0.0
        %2139 = vmatpush1.msra.mxu0 %v2010
        %2140 = vmatprep.subr.mxu0 0.0
        %2141 = vmatpush1.msra.mxu0 %v2011
        %2142 = vmatprep.subr.mxu0 0.0
        %2143 = vmatpush1.msra.mxu0 %v2012
        %2144 = vmatprep.subr.mxu0 0.0
        %2145 = vmatpush1.msra.mxu0 %v2013
        %2146 = vmatprep.subr.mxu0 0.0
        %2147 = vmatpush1.msra.mxu0 %v2014
        %2148 = vmatprep.subr.mxu0 0.0
        %2149 = vmatpush1.msra.mxu0 %v2015
        %2150 = vmatprep.subr.mxu0 0.0
        %2151 = vmatpush1.msra.mxu0 %v2016
        %2152 = vmatprep.subr.mxu0 0.0
        %2153 = vmatpush1.msra.mxu0 %v2017
        %2154 = vmatprep.subr.mxu0 0.0
        %2155 = vmatpush1.msra.mxu0 %v2018
        %2156 = vmatprep.subr.mxu0 0.0
        %2157 = vmatpush1.msra.mxu0 %v2019
        %2158 = vmatprep.subr.mxu0 0.0
        %2159 = vmatpush1.msra.mxu0 %v2020
        %2160 = vmatprep.subr.mxu0 0.0
        %2161 = vmatpush1.msra.mxu0 %v2021
        %2162 = vmatprep.subr.mxu0 0.0
        %2163 = vmatpush1.msra.mxu0 %v2022
        %2164 = vmatprep.subr.mxu0 0.0
        %2165 = vmatpush1.msra.mxu0 %v2023
        %2166 = vmatprep.subr.mxu0 0.0
        %2167 = vmatpush1.msra.mxu0 %v2024
        %2168 = vmatprep.subr.mxu0 0.0
        %2169 = vmatpush1.msra.mxu0 %v2025
        %2170 = vmatprep.subr.mxu0 0.0
        %2171 = vmatpush1.msra.mxu0 %v2026
        %2172 = vmatprep.subr.mxu0 0.0
        %2173 = vmatpush1.msra.mxu0 %v2027
        %2174 = vmatprep.mubr.f32.mxu0 %v1962
        %2175 = vmatmul.mubr.f32.gmra.mrb[0].mxu0 %v1961
        %v2176 = vpop.f32.mrb[0].mxu0
        %v2177 = vadd.f32 %v2107, %v2176
        %v2178 = vpop.f32.mrb[0].mxu0
        %2179 = vdwg.mxu0
        %2180 = vmatprep.subr.mxu0 0.0
        %2181 = vmatpush1.msra.mxu0 %v2028
        %2182 = vmatprep.subr.mxu0 0.0
        %2183 = vmatpush1.msra.mxu0 %v2029
        %2184 = vmatprep.subr.mxu0 0.0
        %2185 = vmatpush1.msra.mxu0 %v2030
        %2186 = vmatprep.subr.mxu0 0.0
        %2187 = vmatpush1.msra.mxu0 %v2031
        %2188 = vmatprep.subr.mxu0 0.0
        %2189 = vmatpush1.msra.mxu0 %v2032
        %2190 = vmatprep.subr.mxu0 0.0
        %2191 = vmatpush1.msra.mxu0 %v2033
        %2192 = vmatprep.subr.mxu0 0.0
        %2193 = vmatpush1.msra.mxu0 %v2034
        %2194 = vmatprep.subr.mxu0 0.0
        %2195 = vmatpush1.msra.mxu0 %v2035
        %2196 = vmatprep.subr.mxu0 0.0
        %2197 = vmatpush1.msra.mxu0 0.0
        %2198 = vmatprep.subr.mxu0 0.0
        %2199 = vmatpush1.msra.mxu0 0.0
        %2200 = vmatprep.subr.mxu0 0.0
        %2201 = vmatpush1.msra.mxu0 0.0
        %2202 = vmatprep.subr.mxu0 0.0
        %2203 = vmatpush1.msra.mxu0 0.0
        %2204 = vmatprep.subr.mxu0 0.0
        %2205 = vmatpush1.msra.mxu0 0.0
        %2206 = vmatprep.subr.mxu0 0.0
        %2207 = vmatpush1.msra.mxu0 0.0
        %2208 = vmatprep.subr.mxu0 0.0
        %2209 = vmatpush1.msra.mxu0 0.0
        %2210 = vmatprep.subr.mxu0 0.0
        %2211 = vmatpush1.msra.mxu0 0.0
        %2212 = vmatprep.subr.mxu0 0.0
        %2213 = vmatpush1.msra.mxu0 0.0
        %2214 = vmatprep.subr.mxu0 0.0
        %2215 = vmatpush1.msra.mxu0 0.0
        %2216 = vmatprep.subr.mxu0 0.0
        %2217 = vmatpush1.msra.mxu0 0.0
        %2218 = vmatprep.subr.mxu0 0.0
        %2219 = vmatpush1.msra.mxu0 0.0
        %2220 = vmatprep.subr.mxu0 0.0
        %2221 = vmatpush1.msra.mxu0 0.0
        %2222 = vmatprep.subr.mxu0 0.0
        %2223 = vmatpush1.msra.mxu0 0.0
        %2224 = vmatprep.subr.mxu0 0.0
        %2225 = vmatpush1.msra.mxu0 0.0
        %2226 = vmatprep.subr.mxu0 0.0
        %2227 = vmatpush1.msra.mxu0 0.0
        %2228 = vmatprep.subr.mxu0 0.0
        %2229 = vmatpush1.msra.mxu0 0.0
        %2230 = vmatprep.subr.mxu0 0.0
        %2231 = vmatpush1.msra.mxu0 0.0
        %2232 = vmatprep.subr.mxu0 0.0
        %2233 = vmatpush1.msra.mxu0 0.0
        %2234 = vmatprep.subr.mxu0 0.0
        %2235 = vmatpush1.msra.mxu0 0.0
        %2236 = vmatprep.subr.mxu0 0.0
        %2237 = vmatpush1.msra.mxu0 0.0
        %2238 = vmatprep.subr.mxu0 0.0
        %2239 = vmatpush1.msra.mxu0 0.0
        %2240 = vmatprep.subr.mxu0 0.0
        %2241 = vmatpush1.msra.mxu0 0.0
        %2242 = vmatprep.subr.mxu0 0.0
        %2243 = vmatpush1.msra.mxu0 0.0
        %2244 = vmatprep.mubr.f32.mxu0 0.0
        %2245 = vmatmul.mubr.f32.gmra.mrb[0].mxu0 %v2038
        %v2246 = vpop.f32.mrb[0].mxu0
        %v2247 = vadd.f32 %v2177, %v2246
        %v2248 = vpop.f32.mrb[0].mxu0
        %2249 = vdwg.mxu0
        %vm2250 = vcmask 66560
        %2251 = vst.msk [vmem:[%s272] sm:$0x3] %vm2250, %v2247
        %s2252 = sand.u32 %s147, 1
        %s2253 = scalar_lea.sflag [#allocation3], %s2252
        %s2254 = sand.u32 %s147, 1
        %s2255 = smul.addr %s2254, 10
        %s2256 = scalar_lea.vmem [#allocation2], %s2255
        %s2257 = sand.u32 %s173, 1
        %s2258 = scalar_lea.sflag [#allocation5], %s2257
        %s2259 = sand.u32 %s173, 1
        %s2260 = smul.addr %s2259, 2
        %s2261 = scalar_lea.vmem [#allocation4], %s2260
        // Predicated region
        $region41: #{tpu_custom_call.1} parent=39 // pred_check
          %p2262 = pneg %p157
        $region42: #{tpu_custom_call.1} parent=39 // pred_check_branch
          %2264 = sbr.rel (%p2262) target = $region44
        $region43: #{tpu_custom_call.1} parent=39 // pred_region
          %s2266 = ssub.s32 160, 160
          %2267 = vsyncadd %s2253, %s2266
          %s2268 = smul.addr %s24, 5
          %s2269 = smul.addr %s2268, 32
          %s2270 = scalar_lea.hbm %s5, %s2269
          %s2272 = sshll.u32 %s2256, 4
          %s2273 = int_to_ptr.vmem [resolvable:$true] %s2272
          %2275 = dma.vmem_to_hbm [thread:$0]  %s2273, 160, %s2270, %s2253
        $region44: #{tpu_custom_call.1} parent=39 // pred_fallthru
          _
        // Predicated region
        $region45: #{tpu_custom_call.1} parent=39 // pred_check
          %p2276 = pneg %p183
        $region46: #{tpu_custom_call.1} parent=39 // pred_check_branch
          %2278 = sbr.rel (%p2276) target = $region48
        $region47: #{tpu_custom_call.1} parent=39 // pred_region
          %s2280 = ssub.s32 32, 32
          %2281 = vsyncadd %s2258, %s2280
          %s2282 = smul.addr %s24, 32
          %s2283 = scalar_lea.hbm %s6, %s2282
          %s2285 = sshll.u32 %s2261, 4
          %s2286 = int_to_ptr.vmem [resolvable:$true] %s2285
          %2288 = dma.vmem_to_hbm [thread:$0]  %s2286, 32, %s2283, %s2258
        $region48: #{tpu_custom_call.1} parent=39 // pred_fallthru
          _
      $region40: #{tpu_custom_call.1} parent=5 // pred_fallthru
        _
      %p2289 = scmp.le.s32.totalorder 2, %s19
      // Predicated region
      $region49: #{tpu_custom_call.1} parent=5 // pred_check
        %p2290 = pneg %p2289
      $region50: #{tpu_custom_call.1} parent=5 // pred_check_branch
        %2292 = sbr.rel (%p2290) target = $region52
      $region51: #{tpu_custom_call.1} parent=5 // pred_region
        %s2293 = ssub.s32 %s19, 2
        // Predicated region
        $region53: #{tpu_custom_call.1} parent=51 // pred_check
          %p2294 = pneg %p163
        $region54: #{tpu_custom_call.1} parent=51 // pred_check_branch
          %2296 = sbr.rel (%p2294) target = $region56
        $region55: #{tpu_custom_call.1} parent=51 // pred_region
          %s2297 = sand.u32 %s148, 1
          %s2298 = scalar_lea.sflag [#allocation3], %s2297
          %s2299 = sand.u32 %s148, 1
          %s2300 = smul.addr %s2299, 10
          %s2301 = scalar_lea.vmem [#allocation2], %s2300
          %2302 = dma.done %s2298, 160
        $region56: #{tpu_custom_call.1} parent=51 // pred_fallthru
          _
        // Predicated region
        $region57: #{tpu_custom_call.1} parent=51 // pred_check
          %p2303 = pneg %p189
        $region58: #{tpu_custom_call.1} parent=51 // pred_check_branch
          %2305 = sbr.rel (%p2303) target = $region60
        $region59: #{tpu_custom_call.1} parent=51 // pred_region
          %s2306 = sand.u32 %s174, 1
          %s2307 = scalar_lea.sflag [#allocation5], %s2306
          %s2308 = sand.u32 %s174, 1
          %s2309 = smul.addr %s2308, 2
          %s2310 = scalar_lea.vmem [#allocation4], %s2309
          %2311 = dma.done %s2307, 32
        $region60: #{tpu_custom_call.1} parent=51 // pred_fallthru
          _
      $region52: #{tpu_custom_call.1} parent=5 // pred_fallthru
        _
    $region6: #{tpu_custom_call.1} parent=1 // loop_footer
      %s23 = sadd.s32 1, %s19
    $region7: #{tpu_custom_call.1} parent=1 // loop_footer_branch
      %18 = sbr.rel target = $region3
    $region8: #{tpu_custom_call.1} parent=1 // loop_exit
      _
    %2312 = vsyncpa [#allocation3], 1
    %s2313 = scalar_lea.sflag [#allocation3], 1
    %2314 = vsyncpa %s2313, 1
    %2315 = vsyncpa [#allocation5], 1
    %s2316 = scalar_lea.sflag [#allocation5], 1
    %2317 = vsyncpa %s2316, 1

</llo_original>
